<compile_context>
chip_gen: v7x
topology: tpu7x:2x2x1
jax: 0.10.0
libtpu: 0.0.40
codegen_flags: <defaults>
</compile_context>

<pallas_src>
import jax
import jax.numpy as jnp
from jax.experimental import pallas as pl
from jax.experimental.pallas import tpu as pltpu


def _round_up(x, m):
    return ((x + m - 1) // m) * m


def make_afm_kernel(n_members, p_row, tg):
    """Build the kernel for a fixed member count / folded-p row / group tile."""
    pairs = [(i, j) for i in range(n_members) for j in range(i + 1, n_members)]
    n_pairs = len(pairs)

    def kernel(e_ref, first_ref, w1_ref, b1_ref, w2_ref, b2_ref, o_ref, v_scr):
        """One grid step == TG groups (groups live on the lane axis throughout).

        e_ref:     [n, Dp, TG]   second-order embeddings (D padded to mult of 8)
        first_ref: [1, TG]       precomputed first-order term (incl. gen_bias)
        w1_ref:    [Hp, Dp]      attention L1 weight^T with the AFM `p` vector
                                 folded in as row `p_row` (rows >= H+1 are zero)
        b1_ref:    [Hp, 1]       attention L1 bias (rows >= H are zero)
        w2_ref:    [Hp, 1]       attention L2 weight (rows >= H are zero, so the
                                 p row / padding never leak into the attention)
        b2_ref:    [1, 1] SMEM   attention L2 bias (scalar)
        o_ref:     [1, TG]       sigmoid(first + second) * 2 - 1
        v_scr:     [Dp, P*TG]    VMEM staging for lane-concatenated pair products
        """
        Hp, Dp = w1_ref.shape
        w1 = w1_ref[...]                                     # [Hp, Dp]
        b2 = b2_ref[0, 0]                                    # scalar from SMEM
        # Lane-broadcasts of the small column operands, hoisted out of the
        # per-pair epilogue (broadcast_in_dim is not CSE'd across iterations).
        b1_b = jnp.broadcast_to(b1_ref[...], (Hp, tg))
        w2_b = jnp.broadcast_to(w2_ref[...], (Hp, tg))

        # Pairwise element-wise products, staged lane-concatenated in VMEM so a
        # single MXU matmul covers all P pairs (one weight push, long N stream).
        # Member slices are re-loaded per pair to keep live ranges short.
        for k, (i, j) in enumerate(pairs):
            v_scr[:, k * tg:(k + 1) * tg] = e_ref[i] * e_ref[j]      # [Dp, TG]

        # Attention L1 for all pairs at once; the folded `p` row of the result
        # is p . v_ij (pre-activation; its bias row and its w2 row are zero).
        z = jnp.dot(w1, v_scr[...], preferred_element_type=jnp.float32)  # [Hp, P*TG]
        s_all = z[p_row:p_row + 1, :]                                    # [1, P*TG]

        att = []   # attention logits a_ij : P x [1, TG]
        pv = []    # p . (v_i * v_j)       : P x [1, TG]
        for k in range(n_pairs):
            zk = z[:, k * tg:(k + 1) * tg]                   # [Hp, TG] lane slice
            hk = jax.nn.sigmoid(zk + b1_b)                   # EUP
            # Attention L2 (30 -> 1): VPU multiply + sublane reduce (XLU) instead
            # of a lane-width-1 MXU matmul.
            ak = jax.nn.sigmoid(jnp.sum(hk * w2_b, axis=0, keepdims=True) + b2)
            att.append(ak)                                   # [1, TG]
            pv.append(s_all[:, k * tg:(k + 1) * tg])         # [1, TG]

        # Softmax over the P pair scores fused with the p-weighted sum.  All ops
        # stay in lane-dense [1, TG] form — no stacked [G, P] tensor, no reshapes.
        m = att[0]
        for a in att[1:]:
            m = jnp.maximum(m, a)
        exps = [jnp.exp(a - m) for a in att]
        denom = exps[0]
        for e in exps[1:]:
            denom = denom + e
        num = exps[0] * pv[0]
        for e, s in zip(exps[1:], pv[1:]):
            num = num + e * s
        second = num / denom                                 # [1, TG]

        o_ref[...] = jax.nn.sigmoid(first_ref[...] + second) * 2.0 - 1.0

    return kernel


def afm_forward(E, f, w1, b1, w2, b2, p, gen_bias, *, tg=256):
    """E: [G, n, D] second-order embeds; f: [G, n, 1] first-order embeds."""
    G, n, D = E.shape
    H = w1.shape[1]
    Dp = _round_up(D, 8)            # sublane padding only (no 128-lane padding)
    Hp = _round_up(H + 1, 8)        # +1 row for the folded `p` vector
    p_row = H
    Gp = _round_up(G, tg)
    n_pairs = n * (n - 1) // 2

    # ---- layout plumbing (wrapper side; fused with the gathers by XLA) -----
    # embeddings: [G, n, D] -> [n, Dp, Gp], groups on the lane axis.
    e_t = jnp.zeros((n, Dp, Gp), jnp.float32)
    e_t = e_t.at[:, :D, :G].set(jnp.transpose(E.astype(jnp.float32), (1, 2, 0)))

    # First-order term.
    # TODO(synk): afm.FirstOrder is referenced but not defined in the source;
    # implemented as the standard AFM first-order term: sum of per-member
    # first-order embeddings plus the global bias.
    first = f.astype(jnp.float32).sum(axis=(1, 2)) + gen_bias.reshape(())
    first_t = jnp.zeros((1, Gp), jnp.float32).at[0, :G].set(first)

    # Attention weights in the kernel's consumer layout: transposed, padded only
    # to a multiple of 8 sublanes, with the AFM `p` vector folded in as an extra
    # w1 row (zero bias, zero w2 weight) so p.v_ij falls out of the same matmul.
    w1_t = jnp.zeros((Hp, Dp), jnp.float32)
    w1_t = w1_t.at[:H, :D].set(w1.T).at[p_row, :D].set(p.reshape(D))
    b1_c = jnp.zeros((Hp, 1), jnp.float32).at[:H, 0].set(b1.reshape(H))
    w2_c = jnp.zeros((Hp, 1), jnp.float32).at[:H, 0].set(w2.reshape(H))
    b2_s = b2.reshape(1, 1).astype(jnp.float32)

    cost = pl.CostEstimate(
        flops=int(Gp) * n_pairs * (2 * Hp * Dp + Dp + 3 * Hp + 8) + 8 * int(Gp),
        transcendentals=int(Gp) * (n_pairs * (Hp + 2) + 1),
        bytes_accessed=4 * (e_t.size + first_t.size + Gp + w1_t.size
                            + b1_c.size + w2_c.size + 1),
    )

    kernel = make_afm_kernel(n, p_row, tg)

    out = pl.pallas_call(
        kernel,
        out_shape=jax.ShapeDtypeStruct((1, Gp), jnp.float32),
        grid_spec=pltpu.PrefetchScalarGridSpec(
            num_scalar_prefetch=0,
            grid=(Gp // tg,),
            in_specs=[
                pl.BlockSpec((n, Dp, tg), lambda i: (0, 0, i)),     # embeddings tile
                pl.BlockSpec((1, tg), lambda i: (0, i)),            # first-order tile
                pl.BlockSpec((Hp, Dp), lambda i: (0, 0)),           # w1^T (+p), resident
                pl.BlockSpec((Hp, 1), lambda i: (0, 0)),            # b1
                pl.BlockSpec((Hp, 1), lambda i: (0, 0)),            # w2
                pl.BlockSpec(memory_space=pltpu.MemorySpace.SMEM),  # b2 scalar
            ],
            out_specs=pl.BlockSpec((1, tg), lambda i: (0, i)),
            scratch_shapes=[pltpu.VMEM((Dp, n_pairs * tg), jnp.float32)],
        ),
        compiler_params=pltpu.CompilerParams(
            dimension_semantics=("parallel",),
        ),
        cost_estimate=cost,
    )(e_t, first_t, w1_t, b1_c, w2_c, b2_s)

    return out[0, :G].reshape(G, 1)


def afm_apply(group, params):
    # Glue: embedding gathers in plain JAX (fused with the layout transposes).
    E = params["person_embed"][group]          # [G, n, D]
    f = params["first_embed"][group]           # [G, n, 1]
    return afm_forward(
        E, f,
        params["att_w1"], params["att_b1"],
        params["att_w2"], params["att_b2"],
        params["p"], params["gen_bias"],
    )


def afm_reference(E, f, w1, b1, w2, b2, p, gen_bias):
    """Pure-JAX reference of the same forward pass (for correctness check)."""
    G, n, D = E.shape
    pairs = [(i, j) for i in range(n) for j in range(i + 1, n)]
    vij = jnp.stack([E[:, i, :] * E[:, j, :] for (i, j) in pairs], axis=1)   # [G,P,D]
    h = jax.nn.sigmoid(jnp.einsum("gpd,dh->gph", vij, w1) + b1.reshape(1, 1, -1))
    a = jax.nn.sigmoid(jnp.einsum("gph,ho->gpo", h, w2) + b2.reshape(1, 1, 1))
    a_hat = jax.nn.softmax(a[..., 0], axis=1)                                # [G,P]
    second = jnp.einsum("gpd,gp,d->g", vij, a_hat, p.reshape(-1))
    first = f.sum(axis=(1, 2)) + gen_bias.reshape(())
    return (jax.nn.sigmoid(first + second) * 2.0 - 1.0).reshape(G, 1)


def init_params(key, num_features, embedding_dim, hidden=30):
    ks = jax.random.split(key, 8)
    return {
        "person_embed": jax.random.normal(ks[0], (num_features + 1, embedding_dim), jnp.float32),
        "first_embed": jax.random.normal(ks[1], (num_features + 1, 1), jnp.float32),
        "att_w1": jax.random.normal(ks[2], (embedding_dim, hidden), jnp.float32) * 0.1,
        "att_b1": jnp.zeros((1, hidden), jnp.float32),
        "att_w2": jax.random.normal(ks[3], (hidden, 1), jnp.float32) * 0.1,
        "att_b2": jnp.zeros((1, 1), jnp.float32),
        "p": jax.random.uniform(ks[4], (1, embedding_dim), jnp.float32),       # torch.rand
        "gen_bias": jax.random.uniform(ks[5], (1, 1), jnp.float32),            # torch.rand
    }


if __name__ == "__main__":
    key = jax.random.PRNGKey(0)
    num_features = 20
    embedding_dim = 32      # small stand-in for config.embedding_dim = 70
    G, n = 512, 4           # 512 groups, 4 members/group -> grid of 2 x 256-lane tiles

    params = init_params(key, num_features, embedding_dim)
    group = jax.random.randint(jax.random.PRNGKey(1), (G, n), 0, num_features + 1, jnp.int32)

    out = jax.jit(afm_apply)(group, params)
    out = jax.block_until_ready(out)
    assert out.shape == (G, 1)
    assert bool(jnp.all(jnp.isfinite(out)))

    # Correctness check against a pure-JAX reference of the same forward pass.
    E = params["person_embed"][group]
    f = params["first_embed"][group]
    ref = afm_reference(E, f, params["att_w1"], params["att_b1"],
                        params["att_w2"], params["att_b2"],
                        params["p"], params["gen_bias"])
    max_err = float(jnp.max(jnp.abs(out - ref)))
    assert max_err < 5e-3, max_err

    print("KERNEL_OK")
</pallas_src>

<mosaic_0001>
module attributes {stable_mosaic.version = 11 : i64} {
  func.func @kernel(%arg0: i32, %arg1: memref<4x32x256xf32, #tpu.memory_space<vmem>>, %arg2: memref<1x256xf32, #tpu.memory_space<vmem>>, %arg3: memref<32x32xf32, #tpu.memory_space<vmem>>, %arg4: memref<32x1xf32, #tpu.memory_space<vmem>>, %arg5: memref<32x1xf32, #tpu.memory_space<vmem>>, %arg6: memref<1x1xf32, #tpu.memory_space<smem>>, %arg7: memref<1x256xf32, #tpu.memory_space<vmem>>, %arg8: memref<32x1536xf32, #tpu.memory_space<vmem>>) attributes {dimension_semantics = [#tpu.dimension_semantics<parallel>], iteration_bounds = array<i64: 2>, scalar_prefetch = 0 : i64, scratch_operands = 1 : i64, tpu.core_type = #tpu.core_type<tc>, window_params = [{transform_indices = @transform_0, window_bounds = array<i64: 4, 32, 256>}, {transform_indices = @transform_1, window_bounds = array<i64: 1, 256>}, {pipeline_mode = #tpu.pipeline_mode<synchronous>, transform_indices = @transform_2, window_bounds = array<i64: 32, 32>}, {pipeline_mode = #tpu.pipeline_mode<synchronous>, transform_indices = @transform_3, window_bounds = array<i64: 32, 1>}, {pipeline_mode = #tpu.pipeline_mode<synchronous>, transform_indices = @transform_4, window_bounds = array<i64: 32, 1>}, {transform_indices = @transform_5, window_bounds = array<i64: 1, 1>}, {transform_indices = @transform_6, window_bounds = array<i64: 1, 256>}]} {
    %c0 = arith.constant 0 : index
    %c0_0 = arith.constant 0 : index
    %0 = vector.load %arg3[%c0, %c0_0] : memref<32x32xf32, #tpu.memory_space<vmem>>, vector<32x32xf32>
    %c0_1 = arith.constant 0 : index
    %c0_2 = arith.constant 0 : index
    %1 = memref.load %arg6[%c0_1, %c0_2] : memref<1x1xf32, #tpu.memory_space<smem>>
    %c0_3 = arith.constant 0 : index
    %c0_4 = arith.constant 0 : index
    %2 = vector.load %arg4[%c0_3, %c0_4] : memref<32x1xf32, #tpu.memory_space<vmem>>, vector<32x1xf32>
    %3 = vector.shape_cast %2 : vector<32x1xf32> to vector<32x1xf32>
    %4 = vector.broadcast %3 : vector<32x1xf32> to vector<32x256xf32>
    %c0_5 = arith.constant 0 : index
    %c0_6 = arith.constant 0 : index
    %5 = vector.load %arg5[%c0_5, %c0_6] : memref<32x1xf32, #tpu.memory_space<vmem>>, vector<32x1xf32>
    %6 = vector.shape_cast %5 : vector<32x1xf32> to vector<32x1xf32>
    %7 = vector.broadcast %6 : vector<32x1xf32> to vector<32x256xf32>
    %c0_7 = arith.constant 0 : index
    %c0_8 = arith.constant 0 : index
    %c0_9 = arith.constant 0 : index
    %8 = vector.load %arg1[%c0_7, %c0_8, %c0_9] : memref<4x32x256xf32, #tpu.memory_space<vmem>>, vector<1x32x256xf32>
    %9 = vector.shape_cast %8 : vector<1x32x256xf32> to vector<32x256xf32>
    %c1 = arith.constant 1 : index
    %c0_10 = arith.constant 0 : index
    %c0_11 = arith.constant 0 : index
    %10 = vector.load %arg1[%c1, %c0_10, %c0_11] : memref<4x32x256xf32, #tpu.memory_space<vmem>>, vector<1x32x256xf32>
    %11 = vector.shape_cast %10 : vector<1x32x256xf32> to vector<32x256xf32>
    %12 = arith.mulf %9, %11 : vector<32x256xf32>
    %c0_12 = arith.constant 0 : index
    %c0_13 = arith.constant 0 : index
    %13 = vector.load %arg8[%c0_12, %c0_13] : memref<32x1536xf32, #tpu.memory_space<vmem>>, vector<32x256xf32>
    tpu.vector_store %arg8[%c0_12, %c0_13], %12 {strides = array<i32>} : memref<32x1536xf32, #tpu.memory_space<vmem>>, vector<32x256xf32>,
    %c0_14 = arith.constant 0 : index
    %c0_15 = arith.constant 0 : index
    %c0_16 = arith.constant 0 : index
    %14 = vector.load %arg1[%c0_14, %c0_15, %c0_16] : memref<4x32x256xf32, #tpu.memory_space<vmem>>, vector<1x32x256xf32>
    %15 = vector.shape_cast %14 : vector<1x32x256xf32> to vector<32x256xf32>
    %c2 = arith.constant 2 : index
    %c0_17 = arith.constant 0 : index
    %c0_18 = arith.constant 0 : index
    %16 = vector.load %arg1[%c2, %c0_17, %c0_18] : memref<4x32x256xf32, #tpu.memory_space<vmem>>, vector<1x32x256xf32>
    %17 = vector.shape_cast %16 : vector<1x32x256xf32> to vector<32x256xf32>
    %18 = arith.mulf %15, %17 : vector<32x256xf32>
    %c0_19 = arith.constant 0 : index
    %c256 = arith.constant 256 : index
    %19 = vector.load %arg8[%c0_19, %c256] : memref<32x1536xf32, #tpu.memory_space<vmem>>, vector<32x256xf32>
    tpu.vector_store %arg8[%c0_19, %c256], %18 {strides = array<i32>} : memref<32x1536xf32, #tpu.memory_space<vmem>>, vector<32x256xf32>,
    %c0_20 = arith.constant 0 : index
    %c0_21 = arith.constant 0 : index
    %c0_22 = arith.constant 0 : index
    %20 = vector.load %arg1[%c0_20, %c0_21, %c0_22] : memref<4x32x256xf32, #tpu.memory_space<vmem>>, vector<1x32x256xf32>
    %21 = vector.shape_cast %20 : vector<1x32x256xf32> to vector<32x256xf32>
    %c3 = arith.constant 3 : index
    %c0_23 = arith.constant 0 : index
    %c0_24 = arith.constant 0 : index
    %22 = vector.load %arg1[%c3, %c0_23, %c0_24] : memref<4x32x256xf32, #tpu.memory_space<vmem>>, vector<1x32x256xf32>
    %23 = vector.shape_cast %22 : vector<1x32x256xf32> to vector<32x256xf32>
    %24 = arith.mulf %21, %23 : vector<32x256xf32>
    %c0_25 = arith.constant 0 : index
    %c512 = arith.constant 512 : index
    %25 = vector.load %arg8[%c0_25, %c512] : memref<32x1536xf32, #tpu.memory_space<vmem>>, vector<32x256xf32>
    tpu.vector_store %arg8[%c0_25, %c512], %24 {strides = array<i32>} : memref<32x1536xf32, #tpu.memory_space<vmem>>, vector<32x256xf32>,
    %c1_26 = arith.constant 1 : index
    %c0_27 = arith.constant 0 : index
    %c0_28 = arith.constant 0 : index
    %26 = vector.load %arg1[%c1_26, %c0_27, %c0_28] : memref<4x32x256xf32, #tpu.memory_space<vmem>>, vector<1x32x256xf32>
    %27 = vector.shape_cast %26 : vector<1x32x256xf32> to vector<32x256xf32>
    %c2_29 = arith.constant 2 : index
    %c0_30 = arith.constant 0 : index
    %c0_31 = arith.constant 0 : index
    %28 = vector.load %arg1[%c2_29, %c0_30, %c0_31] : memref<4x32x256xf32, #tpu.memory_space<vmem>>, vector<1x32x256xf32>
    %29 = vector.shape_cast %28 : vector<1x32x256xf32> to vector<32x256xf32>
    %30 = arith.mulf %27, %29 : vector<32x256xf32>
    %c0_32 = arith.constant 0 : index
    %c768 = arith.constant 768 : index
    %31 = vector.load %arg8[%c0_32, %c768] : memref<32x1536xf32, #tpu.memory_space<vmem>>, vector<32x256xf32>
    tpu.vector_store %arg8[%c0_32, %c768], %30 {strides = array<i32>} : memref<32x1536xf32, #tpu.memory_space<vmem>>, vector<32x256xf32>,
    %c1_33 = arith.constant 1 : index
    %c0_34 = arith.constant 0 : index
    %c0_35 = arith.constant 0 : index
    %32 = vector.load %arg1[%c1_33, %c0_34, %c0_35] : memref<4x32x256xf32, #tpu.memory_space<vmem>>, vector<1x32x256xf32>
    %33 = vector.shape_cast %32 : vector<1x32x256xf32> to vector<32x256xf32>
    %c3_36 = arith.constant 3 : index
    %c0_37 = arith.constant 0 : index
    %c0_38 = arith.constant 0 : index
    %34 = vector.load %arg1[%c3_36, %c0_37, %c0_38] : memref<4x32x256xf32, #tpu.memory_space<vmem>>, vector<1x32x256xf32>
    %35 = vector.shape_cast %34 : vector<1x32x256xf32> to vector<32x256xf32>
    %36 = arith.mulf %33, %35 : vector<32x256xf32>
    %c0_39 = arith.constant 0 : index
    %c1024 = arith.constant 1024 : index
    %37 = vector.load %arg8[%c0_39, %c1024] : memref<32x1536xf32, #tpu.memory_space<vmem>>, vector<32x256xf32>
    tpu.vector_store %arg8[%c0_39, %c1024], %36 {strides = array<i32>} : memref<32x1536xf32, #tpu.memory_space<vmem>>, vector<32x256xf32>,
    %c2_40 = arith.constant 2 : index
    %c0_41 = arith.constant 0 : index
    %c0_42 = arith.constant 0 : index
    %38 = vector.load %arg1[%c2_40, %c0_41, %c0_42] : memref<4x32x256xf32, #tpu.memory_space<vmem>>, vector<1x32x256xf32>
    %39 = vector.shape_cast %38 : vector<1x32x256xf32> to vector<32x256xf32>
    %c3_43 = arith.constant 3 : index
    %c0_44 = arith.constant 0 : index
    %c0_45 = arith.constant 0 : index
    %40 = vector.load %arg1[%c3_43, %c0_44, %c0_45] : memref<4x32x256xf32, #tpu.memory_space<vmem>>, vector<1x32x256xf32>
    %41 = vector.shape_cast %40 : vector<1x32x256xf32> to vector<32x256xf32>
    %42 = arith.mulf %39, %41 : vector<32x256xf32>
    %c0_46 = arith.constant 0 : index
    %c1280 = arith.constant 1280 : index
    %43 = vector.load %arg8[%c0_46, %c1280] : memref<32x1536xf32, #tpu.memory_space<vmem>>, vector<32x256xf32>
    tpu.vector_store %arg8[%c0_46, %c1280], %42 {strides = array<i32>} : memref<32x1536xf32, #tpu.memory_space<vmem>>, vector<32x256xf32>,
    %c0_47 = arith.constant 0 : index
    %c0_48 = arith.constant 0 : index
    %44 = vector.load %arg8[%c0_47, %c0_48] : memref<32x1536xf32, #tpu.memory_space<vmem>>, vector<32x1536xf32>
    %cst = arith.constant dense<0.000000e+00> : vector<32x1536xf32>
    %45 = tpu.matmul %0, %44, %cst {dimension_numbers = #tpu.dot_dimension_numbers<[1], [0], [0], [1], [0, 0, 1, 1], [], []>} : vector<32x32xf32>, vector<32x1536xf32>, vector<32x1536xf32> -> vector<32x1536xf32>
    %46 = vector.extract_strided_slice %45 {offsets = [30, 0], sizes = [1, 1536], strides = [1, 1]} : vector<32x1536xf32> to vector<1x1536xf32>
    %47 = vector.extract_strided_slice %45 {offsets = [0, 0], sizes = [32, 256], strides = [1, 1]} : vector<32x1536xf32> to vector<32x256xf32>
    %48 = arith.addf %47, %4 : vector<32x256xf32>
    %49 = arith.negf %48 : vector<32x256xf32>
    %50 = math.exp %49 : vector<32x256xf32>
    %cst_49 = arith.constant 1.000000e+00 : f32
    %51 = vector.broadcast %cst_49 : f32 to vector<32x256xf32>
    %52 = arith.addf %51, %50 : vector<32x256xf32>
    %53 = arith.divf %51, %52 : vector<32x256xf32>
    %54 = arith.mulf %53, %7 : vector<32x256xf32>
    %cst_50 = arith.constant dense<0.000000e+00> : vector<256xf32>
    %55 = vector.multi_reduction <add>, %54, %cst_50 [0] : vector<32x256xf32> to vector<256xf32>
    %56 = vector.shape_cast %55 : vector<256xf32> to vector<1x256xf32>
    %57 = vector.broadcast %1 : f32 to vector<1x256xf32>
    %58 = arith.addf %56, %57 : vector<1x256xf32>
    %59 = arith.negf %58 : vector<1x256xf32>
    %60 = math.exp %59 : vector<1x256xf32>
    %cst_51 = arith.constant 1.000000e+00 : f32
    %61 = vector.broadcast %cst_51 : f32 to vector<1x256xf32>
    %62 = arith.addf %61, %60 : vector<1x256xf32>
    %63 = arith.divf %61, %62 : vector<1x256xf32>
    %64 = vector.extract_strided_slice %46 {offsets = [0, 0], sizes = [1, 256], strides = [1, 1]} : vector<1x1536xf32> to vector<1x256xf32>
    %65 = vector.extract_strided_slice %45 {offsets = [0, 256], sizes = [32, 256], strides = [1, 1]} : vector<32x1536xf32> to vector<32x256xf32>
    %66 = arith.addf %65, %4 : vector<32x256xf32>
    %67 = arith.negf %66 : vector<32x256xf32>
    %68 = math.exp %67 : vector<32x256xf32>
    %cst_52 = arith.constant 1.000000e+00 : f32
    %69 = vector.broadcast %cst_52 : f32 to vector<32x256xf32>
    %70 = arith.addf %69, %68 : vector<32x256xf32>
    %71 = arith.divf %69, %70 : vector<32x256xf32>
    %72 = arith.mulf %71, %7 : vector<32x256xf32>
    %cst_53 = arith.constant dense<0.000000e+00> : vector<256xf32>
    %73 = vector.multi_reduction <add>, %72, %cst_53 [0] : vector<32x256xf32> to vector<256xf32>
    %74 = vector.shape_cast %73 : vector<256xf32> to vector<1x256xf32>
    %75 = vector.broadcast %1 : f32 to vector<1x256xf32>
    %76 = arith.addf %74, %75 : vector<1x256xf32>
    %77 = arith.negf %76 : vector<1x256xf32>
    %78 = math.exp %77 : vector<1x256xf32>
    %cst_54 = arith.constant 1.000000e+00 : f32
    %79 = vector.broadcast %cst_54 : f32 to vector<1x256xf32>
    %80 = arith.addf %79, %78 : vector<1x256xf32>
    %81 = arith.divf %79, %80 : vector<1x256xf32>
    %82 = vector.extract_strided_slice %46 {offsets = [0, 256], sizes = [1, 256], strides = [1, 1]} : vector<1x1536xf32> to vector<1x256xf32>
    %83 = vector.extract_strided_slice %45 {offsets = [0, 512], sizes = [32, 256], strides = [1, 1]} : vector<32x1536xf32> to vector<32x256xf32>
    %84 = arith.addf %83, %4 : vector<32x256xf32>
    %85 = arith.negf %84 : vector<32x256xf32>
    %86 = math.exp %85 : vector<32x256xf32>
    %cst_55 = arith.constant 1.000000e+00 : f32
    %87 = vector.broadcast %cst_55 : f32 to vector<32x256xf32>
    %88 = arith.addf %87, %86 : vector<32x256xf32>
    %89 = arith.divf %87, %88 : vector<32x256xf32>
    %90 = arith.mulf %89, %7 : vector<32x256xf32>
    %cst_56 = arith.constant dense<0.000000e+00> : vector<256xf32>
    %91 = vector.multi_reduction <add>, %90, %cst_56 [0] : vector<32x256xf32> to vector<256xf32>
    %92 = vector.shape_cast %91 : vector<256xf32> to vector<1x256xf32>
    %93 = vector.broadcast %1 : f32 to vector<1x256xf32>
    %94 = arith.addf %92, %93 : vector<1x256xf32>
    %95 = arith.negf %94 : vector<1x256xf32>
    %96 = math.exp %95 : vector<1x256xf32>
    %cst_57 = arith.constant 1.000000e+00 : f32
    %97 = vector.broadcast %cst_57 : f32 to vector<1x256xf32>
    %98 = arith.addf %97, %96 : vector<1x256xf32>
    %99 = arith.divf %97, %98 : vector<1x256xf32>
    %100 = vector.extract_strided_slice %46 {offsets = [0, 512], sizes = [1, 256], strides = [1, 1]} : vector<1x1536xf32> to vector<1x256xf32>
    %101 = vector.extract_strided_slice %45 {offsets = [0, 768], sizes = [32, 256], strides = [1, 1]} : vector<32x1536xf32> to vector<32x256xf32>
    %102 = arith.addf %101, %4 : vector<32x256xf32>
    %103 = arith.negf %102 : vector<32x256xf32>
    %104 = math.exp %103 : vector<32x256xf32>
    %cst_58 = arith.constant 1.000000e+00 : f32
    %105 = vector.broadcast %cst_58 : f32 to vector<32x256xf32>
    %106 = arith.addf %105, %104 : vector<32x256xf32>
    %107 = arith.divf %105, %106 : vector<32x256xf32>
    %108 = arith.mulf %107, %7 : vector<32x256xf32>
    %cst_59 = arith.constant dense<0.000000e+00> : vector<256xf32>
    %109 = vector.multi_reduction <add>, %108, %cst_59 [0] : vector<32x256xf32> to vector<256xf32>
    %110 = vector.shape_cast %109 : vector<256xf32> to vector<1x256xf32>
    %111 = vector.broadcast %1 : f32 to vector<1x256xf32>
    %112 = arith.addf %110, %111 : vector<1x256xf32>
    %113 = arith.negf %112 : vector<1x256xf32>
    %114 = math.exp %113 : vector<1x256xf32>
    %cst_60 = arith.constant 1.000000e+00 : f32
    %115 = vector.broadcast %cst_60 : f32 to vector<1x256xf32>
    %116 = arith.addf %115, %114 : vector<1x256xf32>
    %117 = arith.divf %115, %116 : vector<1x256xf32>
    %118 = vector.extract_strided_slice %46 {offsets = [0, 768], sizes = [1, 256], strides = [1, 1]} : vector<1x1536xf32> to vector<1x256xf32>
    %119 = vector.extract_strided_slice %45 {offsets = [0, 1024], sizes = [32, 256], strides = [1, 1]} : vector<32x1536xf32> to vector<32x256xf32>
    %120 = arith.addf %119, %4 : vector<32x256xf32>
    %121 = arith.negf %120 : vector<32x256xf32>
    %122 = math.exp %121 : vector<32x256xf32>
    %cst_61 = arith.constant 1.000000e+00 : f32
    %123 = vector.broadcast %cst_61 : f32 to vector<32x256xf32>
    %124 = arith.addf %123, %122 : vector<32x256xf32>
    %125 = arith.divf %123, %124 : vector<32x256xf32>
    %126 = arith.mulf %125, %7 : vector<32x256xf32>
    %cst_62 = arith.constant dense<0.000000e+00> : vector<256xf32>
    %127 = vector.multi_reduction <add>, %126, %cst_62 [0] : vector<32x256xf32> to vector<256xf32>
    %128 = vector.shape_cast %127 : vector<256xf32> to vector<1x256xf32>
    %129 = vector.broadcast %1 : f32 to vector<1x256xf32>
    %130 = arith.addf %128, %129 : vector<1x256xf32>
    %131 = arith.negf %130 : vector<1x256xf32>
    %132 = math.exp %131 : vector<1x256xf32>
    %cst_63 = arith.constant 1.000000e+00 : f32
    %133 = vector.broadcast %cst_63 : f32 to vector<1x256xf32>
    %134 = arith.addf %133, %132 : vector<1x256xf32>
    %135 = arith.divf %133, %134 : vector<1x256xf32>
    %136 = vector.extract_strided_slice %46 {offsets = [0, 1024], sizes = [1, 256], strides = [1, 1]} : vector<1x1536xf32> to vector<1x256xf32>
    %137 = vector.extract_strided_slice %45 {offsets = [0, 1280], sizes = [32, 256], strides = [1, 1]} : vector<32x1536xf32> to vector<32x256xf32>
    %138 = arith.addf %137, %4 : vector<32x256xf32>
    %139 = arith.negf %138 : vector<32x256xf32>
    %140 = math.exp %139 : vector<32x256xf32>
    %cst_64 = arith.constant 1.000000e+00 : f32
    %141 = vector.broadcast %cst_64 : f32 to vector<32x256xf32>
    %142 = arith.addf %141, %140 : vector<32x256xf32>
    %143 = arith.divf %141, %142 : vector<32x256xf32>
    %144 = arith.mulf %143, %7 : vector<32x256xf32>
    %cst_65 = arith.constant dense<0.000000e+00> : vector<256xf32>
    %145 = vector.multi_reduction <add>, %144, %cst_65 [0] : vector<32x256xf32> to vector<256xf32>
    %146 = vector.shape_cast %145 : vector<256xf32> to vector<1x256xf32>
    %147 = vector.broadcast %1 : f32 to vector<1x256xf32>
    %148 = arith.addf %146, %147 : vector<1x256xf32>
    %149 = arith.negf %148 : vector<1x256xf32>
    %150 = math.exp %149 : vector<1x256xf32>
    %cst_66 = arith.constant 1.000000e+00 : f32
    %151 = vector.broadcast %cst_66 : f32 to vector<1x256xf32>
    %152 = arith.addf %151, %150 : vector<1x256xf32>
    %153 = arith.divf %151, %152 : vector<1x256xf32>
    %154 = vector.extract_strided_slice %46 {offsets = [0, 1280], sizes = [1, 256], strides = [1, 1]} : vector<1x1536xf32> to vector<1x256xf32>
    %155 = arith.maximumf %63, %81 : vector<1x256xf32>
    %156 = arith.maximumf %155, %99 : vector<1x256xf32>
    %157 = arith.maximumf %156, %117 : vector<1x256xf32>
    %158 = arith.maximumf %157, %135 : vector<1x256xf32>
    %159 = arith.maximumf %158, %153 : vector<1x256xf32>
    %160 = arith.subf %63, %159 : vector<1x256xf32>
    %161 = math.exp %160 : vector<1x256xf32>
    %162 = arith.subf %81, %159 : vector<1x256xf32>
    %163 = math.exp %162 : vector<1x256xf32>
    %164 = arith.subf %99, %159 : vector<1x256xf32>
    %165 = math.exp %164 : vector<1x256xf32>
    %166 = arith.subf %117, %159 : vector<1x256xf32>
    %167 = math.exp %166 : vector<1x256xf32>
    %168 = arith.subf %135, %159 : vector<1x256xf32>
    %169 = math.exp %168 : vector<1x256xf32>
    %170 = arith.subf %153, %159 : vector<1x256xf32>
    %171 = math.exp %170 : vector<1x256xf32>
    %172 = arith.addf %161, %163 : vector<1x256xf32>
    %173 = arith.addf %172, %165 : vector<1x256xf32>
    %174 = arith.addf %173, %167 : vector<1x256xf32>
    %175 = arith.addf %174, %169 : vector<1x256xf32>
    %176 = arith.addf %175, %171 : vector<1x256xf32>
    %177 = arith.mulf %161, %64 : vector<1x256xf32>
    %178 = arith.mulf %163, %82 : vector<1x256xf32>
    %179 = arith.addf %177, %178 : vector<1x256xf32>
    %180 = arith.mulf %165, %100 : vector<1x256xf32>
    %181 = arith.addf %179, %180 : vector<1x256xf32>
    %182 = arith.mulf %167, %118 : vector<1x256xf32>
    %183 = arith.addf %181, %182 : vector<1x256xf32>
    %184 = arith.mulf %169, %136 : vector<1x256xf32>
    %185 = arith.addf %183, %184 : vector<1x256xf32>
    %186 = arith.mulf %171, %154 : vector<1x256xf32>
    %187 = arith.addf %185, %186 : vector<1x256xf32>
    %188 = arith.divf %187, %176 : vector<1x256xf32>
    %c0_67 = arith.constant 0 : index
    %c0_68 = arith.constant 0 : index
    %189 = vector.load %arg2[%c0_67, %c0_68] : memref<1x256xf32, #tpu.memory_space<vmem>>, vector<1x256xf32>
    %190 = arith.addf %189, %188 : vector<1x256xf32>
    %191 = arith.negf %190 : vector<1x256xf32>
    %192 = math.exp %191 : vector<1x256xf32>
    %cst_69 = arith.constant 1.000000e+00 : f32
    %193 = vector.broadcast %cst_69 : f32 to vector<1x256xf32>
    %194 = arith.addf %193, %192 : vector<1x256xf32>
    %195 = arith.divf %193, %194 : vector<1x256xf32>
    %cst_70 = arith.constant 2.000000e+00 : f32
    %196 = vector.broadcast %cst_70 : f32 to vector<1x256xf32>
    %197 = arith.mulf %195, %196 : vector<1x256xf32>
    %cst_71 = arith.constant 1.000000e+00 : f32
    %198 = vector.broadcast %cst_71 : f32 to vector<1x256xf32>
    %199 = arith.subf %197, %198 : vector<1x256xf32>
    %c0_72 = arith.constant 0 : index
    %c0_73 = arith.constant 0 : index
    %200 = vector.load %arg7[%c0_72, %c0_73] : memref<1x256xf32, #tpu.memory_space<vmem>>, vector<1x256xf32>
    tpu.vector_store %arg7[%c0_72, %c0_73], %199 {strides = array<i32>} : memref<1x256xf32, #tpu.memory_space<vmem>>, vector<1x256xf32>,
    return
  }
  func.func @transform_0(%arg0: i32) -> (i32, i32, i32) {
    %c0_i32 = arith.constant 0 : i32
    %c0_i32_0 = arith.constant 0 : i32
    %c0_i32_1 = arith.constant 0 : i32
    return %c0_i32, %c0_i32_0, %arg0 : i32, i32, i32
  }
  func.func @transform_1(%arg0: i32) -> (i32, i32) {
    %c0_i32 = arith.constant 0 : i32
    %c0_i32_0 = arith.constant 0 : i32
    return %c0_i32, %arg0 : i32, i32
  }
  func.func @transform_2(%arg0: i32) -> (i32, i32) {
    %c0_i32 = arith.constant 0 : i32
    %c0_i32_0 = arith.constant 0 : i32
    %c0_i32_1 = arith.constant 0 : i32
    return %c0_i32, %c0_i32_0 : i32, i32
  }
  func.func @transform_3(%arg0: i32) -> (i32, i32) {
    %c0_i32 = arith.constant 0 : i32
    %c0_i32_0 = arith.constant 0 : i32
    %c0_i32_1 = arith.constant 0 : i32
    return %c0_i32, %c0_i32_0 : i32, i32
  }
  func.func @transform_4(%arg0: i32) -> (i32, i32) {
    %c0_i32 = arith.constant 0 : i32
    %c0_i32_0 = arith.constant 0 : i32
    %c0_i32_1 = arith.constant 0 : i32
    return %c0_i32, %c0_i32_0 : i32, i32
  }
  func.func @transform_5(%arg0: i32) -> (i32, i32) {
    %c0_i32 = arith.constant 0 : i32
    %c0_i32_0 = arith.constant 0 : i32
    %c0_i32_1 = arith.constant 0 : i32
    return %c0_i32, %c0_i32_0 : i32, i32
  }
  func.func @transform_6(%arg0: i32) -> (i32, i32) {
    %c0_i32 = arith.constant 0 : i32
    %c0_i32_0 = arith.constant 0 : i32
    return %c0_i32, %arg0 : i32, i32
  }
}

</mosaic_0001>

<llo_original>
// kernel: afm_apply.1
$region0: #{afm_apply.1}
  #allocation0 [shape = 'u32[]', space=smem, size = 0x4, offset = 0x4, fixed_abs, tag = 'smem constant byte address 0x4 - core index']
  #allocation1 [shape = 'u32[144,128]{1,0:T(1,128)}', space=vmem, size = 0x12000, scoped, tag = 'internal scratch']
  #allocation2 [shape = 'f32[32,1536]{1,0:T(8,128)}', space=vmem, size = 0x30000, scoped, tag = 'scratch operand']
  #allocation3 [shape = 'f32[1,1]{1,0:T(1,128)S(6)}', space=smem, size = 0x200, scoped, tag = 'scoped memory for afm_apply.1']
  %s0 = inlined_call_operand.vmem [shape: f32[4,32,512], index: 0, kind: input, shape index: {}]
  %s1 = inlined_call_operand.vmem [shape: f32[1,512], index: 1, kind: input, shape index: {}]
  %s2 = inlined_call_operand.vmem [shape: f32[32,32], index: 2, kind: input, shape index: {}]
  %s3 = inlined_call_operand.vmem [shape: f32[32,1], index: 3, kind: input, shape index: {}]
  %s4 = inlined_call_operand.vmem [shape: f32[32,1], index: 4, kind: input, shape index: {}]
  %s5 = inlined_call_operand.<no memory space> [shape: f32[1,1], index: 5, kind: input, shape index: {}]
  %s6 = inlined_call_operand.hbm [shape: f32[1,512], index: 6, kind: output, shape index: {}]
  %s7 = sld [smem:[#allocation0]]
  $region80: #{afm_apply.1} parent=0
    _
  %s9 = ssub.s32 1, %s7
  %s10 = scalar_select 0, %s9, %s7
  %11 = sst [smem:[#allocation3]] %s5
  $region1: #{afm_apply.1} parent=0
    #allocation4 [shape = 'u8[262144]{0}', space=vmem, size = 0x40000, scoped, tag = 'input window, operand 0']
    #allocation5 [shape = 'u8[2048]{0}', space=vmem, size = 0x800, scoped, tag = 'output window, operand 0']
    #allocation6 [shape = 's32[2]{0}', space=sflag, size = 0x8, scoped, tag = 'scoped memory for afm_apply.1']
    %12 = vsyncpa [#allocation6], 0
    %s13 = scalar_lea.sflag [#allocation6], 1
    %14 = vsyncpa %s13, 0
    loop: start=0, step=1, limit=4
    $region2: #{afm_apply.1} parent=1 // loop_pre_header
      _
    $region3: #{afm_apply.1} parent=1 // loop_header
      %s16 = sphi 0, %s20
      %p17 = scmp.ge.s32.totalorder %s16, 4
      %s26 = sphi 0, %s28
      %s29 = sphi 0, %s26
      %s30 = sphi 0, %s29
      %s46 = sphi 0, %s30
      %s52 = sphi 0, %s54
      %s55 = sphi 0, %s52
      %s56 = sphi 0, %s55
      %s72 = sphi 0, %s56
      %s76 = sphi 0, %s76
      %s78 = sphi 0, %s76
      %s79 = sphi 0, %s78
      %s93 = sphi 0, %s79
      %s97 = sphi 0, %s97
      %s99 = sphi 0, %s97
      %s100 = sphi 0, %s99
      %s114 = sphi 0, %s100
      %s118 = sphi 0, %s118
      %s120 = sphi 0, %s118
      %s121 = sphi 0, %s120
      %s135 = sphi 0, %s121
      %s139 = sphi 0, %s139
      %s141 = sphi 0, %s139
      %s142 = sphi 0, %s141
      %s156 = sphi 0, %s142
      %s162 = sphi 0, %s164
      %s165 = sphi 0, %s162
      %s166 = sphi 0, %s165
      %s182 = sphi 0, %s166
    $region4: #{afm_apply.1} parent=1 // loop_header_branch
      %19 = sbr.rel (%p17) target = $region8
    $region5: #{afm_apply.1} parent=1 // loop_body
      %s21 = ssub.s32 %s16, 1
      %s22 = ssub.s32 %s16, 2
      %s23 = sadd.s32 %s16, 1
      %s24 = ssub.s32 %s16, %s23
      %p25 = scmp.eq.s32.totalorder %s24, 0
      %s27 = sadd.s32 %s26, 1
      %s28 = scalar_select %p25, %s26, %s27
      %p31 = pneg %p25
      %p32 = scmp.eq.s32.totalorder %s16, 1
      %p33 = por %p31, %p32
      %p34 = scmp.ne.s32.totalorder %s26, %s29
      %p35 = scmp.eq.s32.totalorder %s16, 0
      %p36 = por %p34, %p35
      %p37 = scmp.ne.s32.totalorder %s26, %s29
      %p38 = scmp.eq.s32.totalorder %s21, 1
      %p39 = por %p37, %p38
      %p40 = scmp.ne.s32.totalorder %s29, %s30
      %p41 = scmp.eq.s32.totalorder %s21, 0
      %p42 = por %p40, %p41
      %p43 = scmp.ne.s32.totalorder %s29, %s30
      %p44 = scmp.eq.s32.totalorder %s22, 1
      %p45 = por %p43, %p44
      %p47 = scmp.ne.s32.totalorder %s30, %s46
      %p48 = scmp.eq.s32.totalorder %s22, 0
      %p49 = por %p47, %p48
      %s50 = ssub.s32 %s16, %s23
      %p51 = scmp.eq.s32.totalorder %s50, 0
      %s53 = sadd.s32 %s52, 1
      %s54 = scalar_select %p51, %s52, %s53
      %p57 = pneg %p51
      %p58 = scmp.eq.s32.totalorder %s16, 1
      %p59 = por %p57, %p58
      %p60 = scmp.ne.s32.totalorder %s52, %s55
      %p61 = scmp.eq.s32.totalorder %s16, 0
      %p62 = por %p60, %p61
      %p63 = scmp.ne.s32.totalorder %s52, %s55
      %p64 = scmp.eq.s32.totalorder %s21, 1
      %p65 = por %p63, %p64
      %p66 = scmp.ne.s32.totalorder %s55, %s56
      %p67 = scmp.eq.s32.totalorder %s21, 0
      %p68 = por %p66, %p67
      %p69 = scmp.ne.s32.totalorder %s55, %s56
      %p70 = scmp.eq.s32.totalorder %s22, 1
      %p71 = por %p69, %p70
      %p73 = scmp.ne.s32.totalorder %s56, %s72
      %p74 = scmp.eq.s32.totalorder %s22, 0
      %p75 = por %p73, %p74
      %s77 = sadd.s32 %s76, 1
      %p80 = scmp.eq.s32.totalorder %s16, 1
      %p81 = scmp.ne.s32.totalorder %s76, %s78
      %p82 = scmp.eq.s32.totalorder %s16, 0
      %p83 = por %p81, %p82
      %p84 = scmp.ne.s32.totalorder %s76, %s78
      %p85 = scmp.eq.s32.totalorder %s21, 1
      %p86 = por %p84, %p85
      %p87 = scmp.ne.s32.totalorder %s78, %s79
      %p88 = scmp.eq.s32.totalorder %s21, 0
      %p89 = por %p87, %p88
      %p90 = scmp.ne.s32.totalorder %s78, %s79
      %p91 = scmp.eq.s32.totalorder %s22, 1
      %p92 = por %p90, %p91
      %p94 = scmp.ne.s32.totalorder %s79, %s93
      %p95 = scmp.eq.s32.totalorder %s22, 0
      %p96 = por %p94, %p95
      %s98 = sadd.s32 %s97, 1
      %p101 = scmp.eq.s32.totalorder %s16, 1
      %p102 = scmp.ne.s32.totalorder %s97, %s99
      %p103 = scmp.eq.s32.totalorder %s16, 0
      %p104 = por %p102, %p103
      %p105 = scmp.ne.s32.totalorder %s97, %s99
      %p106 = scmp.eq.s32.totalorder %s21, 1
      %p107 = por %p105, %p106
      %p108 = scmp.ne.s32.totalorder %s99, %s100
      %p109 = scmp.eq.s32.totalorder %s21, 0
      %p110 = por %p108, %p109
      %p111 = scmp.ne.s32.totalorder %s99, %s100
      %p112 = scmp.eq.s32.totalorder %s22, 1
      %p113 = por %p111, %p112
      %p115 = scmp.ne.s32.totalorder %s100, %s114
      %p116 = scmp.eq.s32.totalorder %s22, 0
      %p117 = por %p115, %p116
      %s119 = sadd.s32 %s118, 1
      %p122 = scmp.eq.s32.totalorder %s16, 1
      %p123 = scmp.ne.s32.totalorder %s118, %s120
      %p124 = scmp.eq.s32.totalorder %s16, 0
      %p125 = por %p123, %p124
      %p126 = scmp.ne.s32.totalorder %s118, %s120
      %p127 = scmp.eq.s32.totalorder %s21, 1
      %p128 = por %p126, %p127
      %p129 = scmp.ne.s32.totalorder %s120, %s121
      %p130 = scmp.eq.s32.totalorder %s21, 0
      %p131 = por %p129, %p130
      %p132 = scmp.ne.s32.totalorder %s120, %s121
      %p133 = scmp.eq.s32.totalorder %s22, 1
      %p134 = por %p132, %p133
      %p136 = scmp.ne.s32.totalorder %s121, %s135
      %p137 = scmp.eq.s32.totalorder %s22, 0
      %p138 = por %p136, %p137
      %s140 = sadd.s32 %s139, 1
      %p143 = scmp.eq.s32.totalorder %s16, 1
      %p144 = scmp.ne.s32.totalorder %s139, %s141
      %p145 = scmp.eq.s32.totalorder %s16, 0
      %p146 = por %p144, %p145
      %p147 = scmp.ne.s32.totalorder %s139, %s141
      %p148 = scmp.eq.s32.totalorder %s21, 1
      %p149 = por %p147, %p148
      %p150 = scmp.ne.s32.totalorder %s141, %s142
      %p151 = scmp.eq.s32.totalorder %s21, 0
      %p152 = por %p150, %p151
      %p153 = scmp.ne.s32.totalorder %s141, %s142
      %p154 = scmp.eq.s32.totalorder %s22, 1
      %p155 = por %p153, %p154
      %p157 = scmp.ne.s32.totalorder %s142, %s156
      %p158 = scmp.eq.s32.totalorder %s22, 0
      %p159 = por %p157, %p158
      %s160 = ssub.s32 %s16, %s23
      %p161 = scmp.eq.s32.totalorder %s160, 0
      %s163 = sadd.s32 %s162, 1
      %s164 = scalar_select %p161, %s162, %s163
      %p167 = pneg %p161
      %p168 = scmp.eq.s32.totalorder %s16, 1
      %p169 = por %p167, %p168
      %p170 = scmp.ne.s32.totalorder %s162, %s165
      %p171 = scmp.eq.s32.totalorder %s16, 0
      %p172 = por %p170, %p171
      %p173 = scmp.ne.s32.totalorder %s162, %s165
      %p174 = scmp.eq.s32.totalorder %s21, 1
      %p175 = por %p173, %p174
      %p176 = scmp.ne.s32.totalorder %s165, %s166
      %p177 = scmp.eq.s32.totalorder %s21, 0
      %p178 = por %p176, %p177
      %p179 = scmp.ne.s32.totalorder %s165, %s166
      %p180 = scmp.eq.s32.totalorder %s22, 1
      %p181 = por %p179, %p180
      %p183 = scmp.ne.s32.totalorder %s166, %s182
      %p184 = scmp.eq.s32.totalorder %s22, 0
      %p185 = por %p183, %p184
      %p186 = scmp.le.s32.totalorder 1, %s16
      %p187 = scmp.lt.s32.totalorder %s16, 3
      %p188 = pnand %p186, %p187
      %p189 = pneg %p188
      // Predicated region
      $region9: #{afm_apply.1} parent=5 // pred_check
        _
      $region10: #{afm_apply.1} parent=5 // pred_check_branch
        %191 = sbr.rel (%p188) target = $region12
      $region11: #{afm_apply.1} parent=5 // pred_region
        %s192 = ssub.s32 %s16, 1
        // Predicated region
        $region13: #{afm_apply.1} parent=11 // pred_check
          %p193 = pneg %p89
        $region14: #{afm_apply.1} parent=11 // pred_check_branch
          %195 = sbr.rel (%p193) target = $region16
        $region15: #{afm_apply.1} parent=11 // pred_region
          _
        $region16: #{afm_apply.1} parent=11 // pred_fallthru
          _
        // Predicated region
        $region17: #{afm_apply.1} parent=11 // pred_check
          %p196 = pneg %p110
        $region18: #{afm_apply.1} parent=11 // pred_check_branch
          %198 = sbr.rel (%p196) target = $region20
        $region19: #{afm_apply.1} parent=11 // pred_region
          _
        $region20: #{afm_apply.1} parent=11 // pred_fallthru
          _
        // Predicated region
        $region21: #{afm_apply.1} parent=11 // pred_check
          %p199 = pneg %p131
        $region22: #{afm_apply.1} parent=11 // pred_check_branch
          %201 = sbr.rel (%p199) target = $region24
        $region23: #{afm_apply.1} parent=11 // pred_region
          _
        $region24: #{afm_apply.1} parent=11 // pred_fallthru
          _
        // Predicated region
        $region25: #{afm_apply.1} parent=11 // pred_check
          %p202 = pneg %p152
        $region26: #{afm_apply.1} parent=11 // pred_check_branch
          %204 = sbr.rel (%p202) target = $region28
        $region27: #{afm_apply.1} parent=11 // pred_region
          _
        $region28: #{afm_apply.1} parent=11 // pred_fallthru
          _
      $region12: #{afm_apply.1} parent=5 // pred_fallthru
        _
      %p205 = scmp.lt.s32.totalorder %s16, 2
      // Predicated region
      $region29: #{afm_apply.1} parent=5 // pred_check
        %p206 = pneg %p205
      $region30: #{afm_apply.1} parent=5 // pred_check_branch
        %208 = sbr.rel (%p206) target = $region32
      $region31: #{afm_apply.1} parent=5 // pred_region
        // Predicated region
        $region33: #{afm_apply.1} parent=31 // pred_check
          %p209 = pneg %p36
        $region34: #{afm_apply.1} parent=31 // pred_check_branch
          %211 = sbr.rel (%p209) target = $region36
        $region35: #{afm_apply.1} parent=31 // pred_region
          %s212 = sand.u32 %s26, 1
          %s213 = sand.u32 %s26, 1
          %s214 = smul.addr %s213, 256
          %s215 = scalar_lea.vmem [#allocation4], %s214
          %s216 = smul.u32 2, %s16
          %s217 = smul.addr %s216, 8
          %s218 = scalar_lea.vmem %s0, %s217
          // Predicated region
          $region37: #{afm_apply.1} parent=35 // pred_check
            _
          $region38: #{afm_apply.1} parent=35 // pred_check_branch
            %220 = sbr.rel (0) target = $region40
          $region39: #{afm_apply.1} parent=35 // pred_region
            // Predicated region
            $region41: #{afm_apply.1} parent=39 // pred_check
              _
            $region42: #{afm_apply.1} parent=39 // pred_check_branch
              %222 = sbr.rel (0) target = $region44
            $region43: #{afm_apply.1} parent=39 // pred_region
              loop: start=0, step=1, limit=1
              $region45: #{afm_apply.1} parent=43 // loop_pre_header
                _
              $region46: #{afm_apply.1} parent=43 // loop_header
                %s224 = sphi 0, %s228
                %p225 = scmp.ge.s32.totalorder %s224, 1
                %s229 = sphi %s218, %s218
                %s230 = sphi %s215, %s215
              $region47: #{afm_apply.1} parent=43 // loop_header_branch
                %227 = sbr.rel (%p225) target = $region51
              $region48: #{afm_apply.1} parent=43 // loop_body
                %v231 = vld [vmem:[%s229] sm:$0xff]
                %232 = vst [vmem:[%s230] sm:$0xff] %v231
                %v233 = vld [vmem:[%s229 + $0x8] sm:$0xff]
                %234 = vst [vmem:[%s230 + $0x8] sm:$0xff] %v233
                %v235 = vld [vmem:[%s229 + $0x20] sm:$0xff]
                %236 = vst [vmem:[%s230 + $0x10] sm:$0xff] %v235
                %v237 = vld [vmem:[%s229 + $0x28] sm:$0xff]
                %238 = vst [vmem:[%s230 + $0x18] sm:$0xff] %v237
                %v239 = vld [vmem:[%s229 + $0x40] sm:$0xff]
                %240 = vst [vmem:[%s230 + $0x20] sm:$0xff] %v239
                %v241 = vld [vmem:[%s229 + $0x48] sm:$0xff]
                %242 = vst [vmem:[%s230 + $0x28] sm:$0xff] %v241
                %v243 = vld [vmem:[%s229 + $0x60] sm:$0xff]
                %244 = vst [vmem:[%s230 + $0x30] sm:$0xff] %v243
                %v245 = vld [vmem:[%s229 + $0x68] sm:$0xff]
                %246 = vst [vmem:[%s230 + $0x38] sm:$0xff] %v245
                %v247 = vld [vmem:[%s229 + $0x80] sm:$0xff]
                %248 = vst [vmem:[%s230 + $0x40] sm:$0xff] %v247
                %v249 = vld [vmem:[%s229 + $0x88] sm:$0xff]
                %250 = vst [vmem:[%s230 + $0x48] sm:$0xff] %v249
                %v251 = vld [vmem:[%s229 + $0xa0] sm:$0xff]
                %252 = vst [vmem:[%s230 + $0x50] sm:$0xff] %v251
                %v253 = vld [vmem:[%s229 + $0xa8] sm:$0xff]
                %254 = vst [vmem:[%s230 + $0x58] sm:$0xff] %v253
                %v255 = vld [vmem:[%s229 + $0xc0] sm:$0xff]
                %256 = vst [vmem:[%s230 + $0x60] sm:$0xff] %v255
                %v257 = vld [vmem:[%s229 + $0xc8] sm:$0xff]
                %258 = vst [vmem:[%s230 + $0x68] sm:$0xff] %v257
                %v259 = vld [vmem:[%s229 + $0xe0] sm:$0xff]
                %260 = vst [vmem:[%s230 + $0x70] sm:$0xff] %v259
                %v261 = vld [vmem:[%s229 + $0xe8] sm:$0xff]
                %262 = vst [vmem:[%s230 + $0x78] sm:$0xff] %v261
                %v263 = vld [vmem:[%s229 + $0x100] sm:$0xff]
                %264 = vst [vmem:[%s230 + $0x80] sm:$0xff] %v263
                %v265 = vld [vmem:[%s229 + $0x108] sm:$0xff]
                %266 = vst [vmem:[%s230 + $0x88] sm:$0xff] %v265
                %v267 = vld [vmem:[%s229 + $0x120] sm:$0xff]
                %268 = vst [vmem:[%s230 + $0x90] sm:$0xff] %v267
                %v269 = vld [vmem:[%s229 + $0x128] sm:$0xff]
                %270 = vst [vmem:[%s230 + $0x98] sm:$0xff] %v269
                %v271 = vld [vmem:[%s229 + $0x140] sm:$0xff]
                %272 = vst [vmem:[%s230 + $0xa0] sm:$0xff] %v271
                %v273 = vld [vmem:[%s229 + $0x148] sm:$0xff]
                %274 = vst [vmem:[%s230 + $0xa8] sm:$0xff] %v273
                %v275 = vld [vmem:[%s229 + $0x160] sm:$0xff]
                %276 = vst [vmem:[%s230 + $0xb0] sm:$0xff] %v275
                %v277 = vld [vmem:[%s229 + $0x168] sm:$0xff]
                %278 = vst [vmem:[%s230 + $0xb8] sm:$0xff] %v277
                %v279 = vld [vmem:[%s229 + $0x180] sm:$0xff]
                %280 = vst [vmem:[%s230 + $0xc0] sm:$0xff] %v279
                %v281 = vld [vmem:[%s229 + $0x188] sm:$0xff]
                %282 = vst [vmem:[%s230 + $0xc8] sm:$0xff] %v281
                %v283 = vld [vmem:[%s229 + $0x1a0] sm:$0xff]
                %284 = vst [vmem:[%s230 + $0xd0] sm:$0xff] %v283
                %v285 = vld [vmem:[%s229 + $0x1a8] sm:$0xff]
                %286 = vst [vmem:[%s230 + $0xd8] sm:$0xff] %v285
                %v287 = vld [vmem:[%s229 + $0x1c0] sm:$0xff]
                %288 = vst [vmem:[%s230 + $0xe0] sm:$0xff] %v287
                %v289 = vld [vmem:[%s229 + $0x1c8] sm:$0xff]
                %290 = vst [vmem:[%s230 + $0xe8] sm:$0xff] %v289
                %v291 = vld [vmem:[%s229 + $0x1e0] sm:$0xff]
                %292 = vst [vmem:[%s230 + $0xf0] sm:$0xff] %v291
                %v293 = vld [vmem:[%s229 + $0x1e8] sm:$0xff]
                %294 = vst [vmem:[%s230 + $0xf8] sm:$0xff] %v293
              $region49: #{afm_apply.1} parent=43 // loop_footer
                %s228 = sadd.s32 1, %s224
              $region50: #{afm_apply.1} parent=43 // loop_footer_branch
                %223 = sbr.rel target = $region46
              $region51: #{afm_apply.1} parent=43 // loop_exit
                _
            $region44: #{afm_apply.1} parent=39 // pred_fallthru
              _
            // Predicated region
            $region52: #{afm_apply.1} parent=39 // pred_check
              _
            $region53: #{afm_apply.1} parent=39 // pred_check_branch
              %296 = sbr.rel target = $region55
            $region54: #{afm_apply.1} parent=39 // pred_region
              _
            $region55: #{afm_apply.1} parent=39 // pred_fallthru
              _
          $region40: #{afm_apply.1} parent=35 // pred_fallthru
            _
          %297 = vnop
        $region36: #{afm_apply.1} parent=31 // pred_fallthru
          _
        // Predicated region
        $region56: #{afm_apply.1} parent=31 // pred_check
          %p298 = pneg %p62
        $region57: #{afm_apply.1} parent=31 // pred_check_branch
          %300 = sbr.rel (%p298) target = $region59
        $region58: #{afm_apply.1} parent=31 // pred_region
          %s301 = smul.u32 2, %s16
          %p302 = scmp.lt.s32.totalorder %s301, 3
          %s303 = scalar_select %p302, %s301, 3
          %s304 = scalar_lea.vmem %s1, %s303
          %s305 = smul.u32 2, %s16
        $region59: #{afm_apply.1} parent=31 // pred_fallthru
          _
      $region32: #{afm_apply.1} parent=5 // pred_fallthru
        _
      %p306 = scmp.le.s32.totalorder 1, %s16
      %p307 = scmp.lt.s32.totalorder %s16, 3
      %p308 = pnand %p306, %p307
      %p309 = pneg %p308
      // Predicated region
      $region60: #{afm_apply.1} parent=5 // pred_check
        _
      $region61: #{afm_apply.1} parent=5 // pred_check_branch
        %311 = sbr.rel (%p308) target = $region63
      $region62: #{afm_apply.1} parent=5 // pred_region
        %s312 = ssub.s32 %s16, 1
        %s313 = sand.u32 %s29, 1
        %s314 = sand.u32 %s29, 1
        %s315 = smul.addr %s314, 256
        %s316 = scalar_lea.vmem [#allocation4], %s315
        // Predicated region
        $region64: #{afm_apply.1} parent=62 // pred_check
          %p317 = pneg %p42
        $region65: #{afm_apply.1} parent=62 // pred_check_branch
          %319 = sbr.rel (%p317) target = $region67
        $region66: #{afm_apply.1} parent=62 // pred_region
          _
        $region67: #{afm_apply.1} parent=62 // pred_fallthru
          _
        %s320 = sand.u32 %s29, 1
        %s321 = sand.u32 %s29, 1
        %s322 = smul.addr %s321, 256
        %s323 = scalar_lea.vmem [#allocation4], %s322
        %p324 = pneg %p42
        %p325 = pneg %p39
        %s326 = smul.u32 2, %s21
        %p327 = scmp.lt.s32.totalorder %s326, 3
        %s328 = scalar_select %p327, %s326, 3
        %s329 = scalar_lea.vmem %s1, %s328
        %p330 = pneg %p68
        %p331 = pneg %p65
        %p332 = pneg %p89
        %p333 = pneg %p86
        %p334 = pneg %p110
        %p335 = pneg %p107
        %p336 = pneg %p131
        %p337 = pneg %p128
        %p338 = pneg %p152
        %p339 = pneg %p149
        %p340 = pneg %p178
        %p341 = pneg %p175
        %s342 = sand.u32 %s165, 1
        %s343 = scalar_lea.sflag [#allocation6], %s342
        %s344 = sand.u32 %s165, 1
        %s345 = smul.addr %s344, 2
        %s346 = scalar_lea.vmem [#allocation5], %s345
        %s347 = smul.u32 2, %s21
        %s348 = smul.u32 2, %s21
        %p349 = scmp.lt.s32.totalorder %s348, 3
        %s350 = scalar_select %p349, %s348, 3
        %s351 = scalar_lea.vmem %s1, %s350
        %s352 = smul.u32 2, %s21
        %s353 = smul.u32 2, %s21
        %v354 = vld [vmem:[%s2] sm:$0xff]
        %v355 = vld [vmem:[%s2 + $0x8] sm:$0xff]
        %v356 = vld [vmem:[%s2 + $0x10] sm:$0xff]
        %v357 = vld [vmem:[%s2 + $0x18] sm:$0xff]
        %s358 = sld [smem:[#allocation3]]
        %v359 = vld [vmem:[%s3] sm:$0xff]
        %v360 = vld [vmem:[%s3 + $0x8] sm:$0xff]
        %v361 = vld [vmem:[%s3 + $0x10] sm:$0xff]
        %v362 = vld [vmem:[%s3 + $0x18] sm:$0xff]
        %364 = vset.pattern.permute.xlu0 0
        %365 = vperm.xlu0 %364, %v359
        %v366 = vpop.permute.xlu0 %365
        %369 = vset.pattern.permute.xlu0 0
        %370 = vperm.xlu0 %369, %v360
        %v371 = vpop.permute.xlu0 %370
        %374 = vset.pattern.permute.xlu0 0
        %375 = vperm.xlu0 %374, %v361
        %v376 = vpop.permute.xlu0 %375
        %379 = vset.pattern.permute.xlu0 0
        %380 = vperm.xlu0 %379, %v362
        %v381 = vpop.permute.xlu0 %380
        %v383 = vld [vmem:[%s4] sm:$0xff]
        %v384 = vld [vmem:[%s4 + $0x8] sm:$0xff]
        %v385 = vld [vmem:[%s4 + $0x10] sm:$0xff]
        %v386 = vld [vmem:[%s4 + $0x18] sm:$0xff]
        %388 = vset.pattern.permute.xlu0 0
        %389 = vperm.xlu0 %388, %v383
        %v390 = vpop.permute.xlu0 %389
        %393 = vset.pattern.permute.xlu0 0
        %394 = vperm.xlu0 %393, %v384
        %v395 = vpop.permute.xlu0 %394
        %398 = vset.pattern.permute.xlu0 0
        %399 = vperm.xlu0 %398, %v385
        %v400 = vpop.permute.xlu0 %399
        %403 = vset.pattern.permute.xlu0 0
        %404 = vperm.xlu0 %403, %v386
        %v405 = vpop.permute.xlu0 %404
        %v407 = vld [vmem:[%s316] sm:$0xff]
        %v408 = vld [vmem:[%s316 + $0x8] sm:$0xff]
        %v409 = vld [vmem:[%s316 + $0x10] sm:$0xff]
        %v410 = vld [vmem:[%s316 + $0x18] sm:$0xff]
        %v411 = vld [vmem:[%s316 + $0x20] sm:$0xff]
        %v412 = vld [vmem:[%s316 + $0x28] sm:$0xff]
        %v413 = vld [vmem:[%s316 + $0x30] sm:$0xff]
        %v414 = vld [vmem:[%s316 + $0x38] sm:$0xff]
        %s415 = scalar_lea.vmem %s316, 64 [#allocation4]
        %v416 = vld [vmem:[%s415] sm:$0xff]
        %v417 = vld [vmem:[%s415 + $0x8] sm:$0xff]
        %v418 = vld [vmem:[%s415 + $0x10] sm:$0xff]
        %v419 = vld [vmem:[%s415 + $0x18] sm:$0xff]
        %v420 = vld [vmem:[%s415 + $0x20] sm:$0xff]
        %v421 = vld [vmem:[%s415 + $0x28] sm:$0xff]
        %v422 = vld [vmem:[%s415 + $0x30] sm:$0xff]
        %v423 = vld [vmem:[%s415 + $0x38] sm:$0xff]
        %v424 = vmul.f32 %v407, %v416
        %v425 = vmul.f32 %v408, %v417
        %v426 = vmul.f32 %v409, %v418
        %v427 = vmul.f32 %v410, %v419
        %v428 = vmul.f32 %v411, %v420
        %v429 = vmul.f32 %v412, %v421
        %v430 = vmul.f32 %v413, %v422
        %v431 = vmul.f32 %v414, %v423
        %432 = vst [vmem:[#allocation2] sm:$0xff] %v424
        %433 = vst [vmem:[#allocation2 + $0x8] sm:$0xff] %v425
        %434 = vst [vmem:[#allocation2 + $0x60] sm:$0xff] %v426
        %435 = vst [vmem:[#allocation2 + $0x68] sm:$0xff] %v427
        %436 = vst [vmem:[#allocation2 + $0xc0] sm:$0xff] %v428
        %437 = vst [vmem:[#allocation2 + $0xc8] sm:$0xff] %v429
        %438 = vst [vmem:[#allocation2 + $0x120] sm:$0xff] %v430
        %439 = vst [vmem:[#allocation2 + $0x128] sm:$0xff] %v431
        %v440 = vld [vmem:[%s316] sm:$0xff]
        %v441 = vld [vmem:[%s316 + $0x8] sm:$0xff]
        %v442 = vld [vmem:[%s316 + $0x10] sm:$0xff]
        %v443 = vld [vmem:[%s316 + $0x18] sm:$0xff]
        %v444 = vld [vmem:[%s316 + $0x20] sm:$0xff]
        %v445 = vld [vmem:[%s316 + $0x28] sm:$0xff]
        %v446 = vld [vmem:[%s316 + $0x30] sm:$0xff]
        %v447 = vld [vmem:[%s316 + $0x38] sm:$0xff]
        %s448 = scalar_lea.vmem %s316, 128 [#allocation4]
        %v449 = vld [vmem:[%s448] sm:$0xff]
        %v450 = vld [vmem:[%s448 + $0x8] sm:$0xff]
        %v451 = vld [vmem:[%s448 + $0x10] sm:$0xff]
        %v452 = vld [vmem:[%s448 + $0x18] sm:$0xff]
        %v453 = vld [vmem:[%s448 + $0x20] sm:$0xff]
        %v454 = vld [vmem:[%s448 + $0x28] sm:$0xff]
        %v455 = vld [vmem:[%s448 + $0x30] sm:$0xff]
        %v456 = vld [vmem:[%s448 + $0x38] sm:$0xff]
        %v457 = vmul.f32 %v440, %v449
        %v458 = vmul.f32 %v441, %v450
        %v459 = vmul.f32 %v442, %v451
        %v460 = vmul.f32 %v443, %v452
        %v461 = vmul.f32 %v444, %v453
        %v462 = vmul.f32 %v445, %v454
        %v463 = vmul.f32 %v446, %v455
        %v464 = vmul.f32 %v447, %v456
        %465 = vst [vmem:[#allocation2 + $0x10] sm:$0xff] %v457
        %466 = vst [vmem:[#allocation2 + $0x18] sm:$0xff] %v458
        %467 = vst [vmem:[#allocation2 + $0x70] sm:$0xff] %v459
        %468 = vst [vmem:[#allocation2 + $0x78] sm:$0xff] %v460
        %469 = vst [vmem:[#allocation2 + $0xd0] sm:$0xff] %v461
        %470 = vst [vmem:[#allocation2 + $0xd8] sm:$0xff] %v462
        %471 = vst [vmem:[#allocation2 + $0x130] sm:$0xff] %v463
        %472 = vst [vmem:[#allocation2 + $0x138] sm:$0xff] %v464
        %v473 = vld [vmem:[%s316] sm:$0xff]
        %v474 = vld [vmem:[%s316 + $0x8] sm:$0xff]
        %v475 = vld [vmem:[%s316 + $0x10] sm:$0xff]
        %v476 = vld [vmem:[%s316 + $0x18] sm:$0xff]
        %v477 = vld [vmem:[%s316 + $0x20] sm:$0xff]
        %v478 = vld [vmem:[%s316 + $0x28] sm:$0xff]
        %v479 = vld [vmem:[%s316 + $0x30] sm:$0xff]
        %v480 = vld [vmem:[%s316 + $0x38] sm:$0xff]
        %s481 = scalar_lea.vmem %s316, 192 [#allocation4]
        %v482 = vld [vmem:[%s481] sm:$0xff]
        %v483 = vld [vmem:[%s481 + $0x8] sm:$0xff]
        %v484 = vld [vmem:[%s481 + $0x10] sm:$0xff]
        %v485 = vld [vmem:[%s481 + $0x18] sm:$0xff]
        %v486 = vld [vmem:[%s481 + $0x20] sm:$0xff]
        %v487 = vld [vmem:[%s481 + $0x28] sm:$0xff]
        %v488 = vld [vmem:[%s481 + $0x30] sm:$0xff]
        %v489 = vld [vmem:[%s481 + $0x38] sm:$0xff]
        %v490 = vmul.f32 %v473, %v482
        %v491 = vmul.f32 %v474, %v483
        %v492 = vmul.f32 %v475, %v484
        %v493 = vmul.f32 %v476, %v485
        %v494 = vmul.f32 %v477, %v486
        %v495 = vmul.f32 %v478, %v487
        %v496 = vmul.f32 %v479, %v488
        %v497 = vmul.f32 %v480, %v489
        %498 = vst [vmem:[#allocation2 + $0x20] sm:$0xff] %v490
        %499 = vst [vmem:[#allocation2 + $0x28] sm:$0xff] %v491
        %500 = vst [vmem:[#allocation2 + $0x80] sm:$0xff] %v492
        %501 = vst [vmem:[#allocation2 + $0x88] sm:$0xff] %v493
        %502 = vst [vmem:[#allocation2 + $0xe0] sm:$0xff] %v494
        %503 = vst [vmem:[#allocation2 + $0xe8] sm:$0xff] %v495
        %504 = vst [vmem:[#allocation2 + $0x140] sm:$0xff] %v496
        %505 = vst [vmem:[#allocation2 + $0x148] sm:$0xff] %v497
        %v506 = vld [vmem:[%s415] sm:$0xff]
        %v507 = vld [vmem:[%s415 + $0x8] sm:$0xff]
        %v508 = vld [vmem:[%s415 + $0x10] sm:$0xff]
        %v509 = vld [vmem:[%s415 + $0x18] sm:$0xff]
        %v510 = vld [vmem:[%s415 + $0x20] sm:$0xff]
        %v511 = vld [vmem:[%s415 + $0x28] sm:$0xff]
        %v512 = vld [vmem:[%s415 + $0x30] sm:$0xff]
        %v513 = vld [vmem:[%s415 + $0x38] sm:$0xff]
        %v514 = vld [vmem:[%s448] sm:$0xff]
        %v515 = vld [vmem:[%s448 + $0x8] sm:$0xff]
        %v516 = vld [vmem:[%s448 + $0x10] sm:$0xff]
        %v517 = vld [vmem:[%s448 + $0x18] sm:$0xff]
        %v518 = vld [vmem:[%s448 + $0x20] sm:$0xff]
        %v519 = vld [vmem:[%s448 + $0x28] sm:$0xff]
        %v520 = vld [vmem:[%s448 + $0x30] sm:$0xff]
        %v521 = vld [vmem:[%s448 + $0x38] sm:$0xff]
        %v522 = vmul.f32 %v506, %v514
        %v523 = vmul.f32 %v507, %v515
        %v524 = vmul.f32 %v508, %v516
        %v525 = vmul.f32 %v509, %v517
        %v526 = vmul.f32 %v510, %v518
        %v527 = vmul.f32 %v511, %v519
        %v528 = vmul.f32 %v512, %v520
        %v529 = vmul.f32 %v513, %v521
        %530 = vst [vmem:[#allocation2 + $0x30] sm:$0xff] %v522
        %531 = vst [vmem:[#allocation2 + $0x38] sm:$0xff] %v523
        %532 = vst [vmem:[#allocation2 + $0x90] sm:$0xff] %v524
        %533 = vst [vmem:[#allocation2 + $0x98] sm:$0xff] %v525
        %534 = vst [vmem:[#allocation2 + $0xf0] sm:$0xff] %v526
        %535 = vst [vmem:[#allocation2 + $0xf8] sm:$0xff] %v527
        %536 = vst [vmem:[#allocation2 + $0x150] sm:$0xff] %v528
        %537 = vst [vmem:[#allocation2 + $0x158] sm:$0xff] %v529
        %v538 = vld [vmem:[%s415] sm:$0xff]
        %v539 = vld [vmem:[%s415 + $0x8] sm:$0xff]
        %v540 = vld [vmem:[%s415 + $0x10] sm:$0xff]
        %v541 = vld [vmem:[%s415 + $0x18] sm:$0xff]
        %v542 = vld [vmem:[%s415 + $0x20] sm:$0xff]
        %v543 = vld [vmem:[%s415 + $0x28] sm:$0xff]
        %v544 = vld [vmem:[%s415 + $0x30] sm:$0xff]
        %v545 = vld [vmem:[%s415 + $0x38] sm:$0xff]
        %v546 = vld [vmem:[%s481] sm:$0xff]
        %v547 = vld [vmem:[%s481 + $0x8] sm:$0xff]
        %v548 = vld [vmem:[%s481 + $0x10] sm:$0xff]
        %v549 = vld [vmem:[%s481 + $0x18] sm:$0xff]
        %v550 = vld [vmem:[%s481 + $0x20] sm:$0xff]
        %v551 = vld [vmem:[%s481 + $0x28] sm:$0xff]
        %v552 = vld [vmem:[%s481 + $0x30] sm:$0xff]
        %v553 = vld [vmem:[%s481 + $0x38] sm:$0xff]
        %v554 = vmul.f32 %v538, %v546
        %v555 = vmul.f32 %v539, %v547
        %v556 = vmul.f32 %v540, %v548
        %v557 = vmul.f32 %v541, %v549
        %v558 = vmul.f32 %v542, %v550
        %v559 = vmul.f32 %v543, %v551
        %v560 = vmul.f32 %v544, %v552
        %v561 = vmul.f32 %v545, %v553
        %562 = vst [vmem:[#allocation2 + $0x40] sm:$0xff] %v554
        %563 = vst [vmem:[#allocation2 + $0x48] sm:$0xff] %v555
        %564 = vst [vmem:[#allocation2 + $0xa0] sm:$0xff] %v556
        %565 = vst [vmem:[#allocation2 + $0xa8] sm:$0xff] %v557
        %566 = vst [vmem:[#allocation2 + $0x100] sm:$0xff] %v558
        %567 = vst [vmem:[#allocation2 + $0x108] sm:$0xff] %v559
        %568 = vst [vmem:[#allocation2 + $0x160] sm:$0xff] %v560
        %569 = vst [vmem:[#allocation2 + $0x168] sm:$0xff] %v561
        %v570 = vld [vmem:[%s448] sm:$0xff]
        %v571 = vld [vmem:[%s448 + $0x8] sm:$0xff]
        %v572 = vld [vmem:[%s448 + $0x10] sm:$0xff]
        %v573 = vld [vmem:[%s448 + $0x18] sm:$0xff]
        %v574 = vld [vmem:[%s448 + $0x20] sm:$0xff]
        %v575 = vld [vmem:[%s448 + $0x28] sm:$0xff]
        %v576 = vld [vmem:[%s448 + $0x30] sm:$0xff]
        %v577 = vld [vmem:[%s448 + $0x38] sm:$0xff]
        %v578 = vld [vmem:[%s481] sm:$0xff]
        %v579 = vld [vmem:[%s481 + $0x8] sm:$0xff]
        %v580 = vld [vmem:[%s481 + $0x10] sm:$0xff]
        %v581 = vld [vmem:[%s481 + $0x18] sm:$0xff]
        %v582 = vld [vmem:[%s481 + $0x20] sm:$0xff]
        %v583 = vld [vmem:[%s481 + $0x28] sm:$0xff]
        %v584 = vld [vmem:[%s481 + $0x30] sm:$0xff]
        %v585 = vld [vmem:[%s481 + $0x38] sm:$0xff]
        %v586 = vmul.f32 %v570, %v578
        %v587 = vmul.f32 %v571, %v579
        %v588 = vmul.f32 %v572, %v580
        %v589 = vmul.f32 %v573, %v581
        %v590 = vmul.f32 %v574, %v582
        %v591 = vmul.f32 %v575, %v583
        %v592 = vmul.f32 %v576, %v584
        %v593 = vmul.f32 %v577, %v585
        %594 = vst [vmem:[#allocation2 + $0x50] sm:$0xff] %v586
        %595 = vst [vmem:[#allocation2 + $0x58] sm:$0xff] %v587
        %596 = vst [vmem:[#allocation2 + $0xb0] sm:$0xff] %v588
        %597 = vst [vmem:[#allocation2 + $0xb8] sm:$0xff] %v589
        %598 = vst [vmem:[#allocation2 + $0x110] sm:$0xff] %v590
        %599 = vst [vmem:[#allocation2 + $0x118] sm:$0xff] %v591
        %600 = vst [vmem:[#allocation2 + $0x170] sm:$0xff] %v592
        %601 = vst [vmem:[#allocation2 + $0x178] sm:$0xff] %v593
        %v602 = vld [vmem:[#allocation2] sm:$0xff]
        %v603 = vld [vmem:[#allocation2 + $0x8] sm:$0xff]
        %v604 = vld [vmem:[#allocation2 + $0x10] sm:$0xff]
        %v605 = vld [vmem:[#allocation2 + $0x18] sm:$0xff]
        %v606 = vld [vmem:[#allocation2 + $0x20] sm:$0xff]
        %v607 = vld [vmem:[#allocation2 + $0x28] sm:$0xff]
        %v608 = vld [vmem:[#allocation2 + $0x30] sm:$0xff]
        %v609 = vld [vmem:[#allocation2 + $0x38] sm:$0xff]
        %v610 = vld [vmem:[#allocation2 + $0x40] sm:$0xff]
        %v611 = vld [vmem:[#allocation2 + $0x48] sm:$0xff]
        %v612 = vld [vmem:[#allocation2 + $0x50] sm:$0xff]
        %v613 = vld [vmem:[#allocation2 + $0x58] sm:$0xff]
        %v614 = vld [vmem:[#allocation2 + $0x60] sm:$0xff]
        %v615 = vld [vmem:[#allocation2 + $0x68] sm:$0xff]
        %v616 = vld [vmem:[#allocation2 + $0x70] sm:$0xff]
        %v617 = vld [vmem:[#allocation2 + $0x78] sm:$0xff]
        %v618 = vld [vmem:[#allocation2 + $0x80] sm:$0xff]
        %v619 = vld [vmem:[#allocation2 + $0x88] sm:$0xff]
        %v620 = vld [vmem:[#allocation2 + $0x90] sm:$0xff]
        %v621 = vld [vmem:[#allocation2 + $0x98] sm:$0xff]
        %v622 = vld [vmem:[#allocation2 + $0xa0] sm:$0xff]
        %v623 = vld [vmem:[#allocation2 + $0xa8] sm:$0xff]
        %v624 = vld [vmem:[#allocation2 + $0xb0] sm:$0xff]
        %v625 = vld [vmem:[#allocation2 + $0xb8] sm:$0xff]
        %v626 = vld [vmem:[#allocation2 + $0xc0] sm:$0xff]
        %v627 = vld [vmem:[#allocation2 + $0xc8] sm:$0xff]
        %v628 = vld [vmem:[#allocation2 + $0xd0] sm:$0xff]
        %v629 = vld [vmem:[#allocation2 + $0xd8] sm:$0xff]
        %v630 = vld [vmem:[#allocation2 + $0xe0] sm:$0xff]
        %v631 = vld [vmem:[#allocation2 + $0xe8] sm:$0xff]
        %v632 = vld [vmem:[#allocation2 + $0xf0] sm:$0xff]
        %v633 = vld [vmem:[#allocation2 + $0xf8] sm:$0xff]
        %v634 = vld [vmem:[#allocation2 + $0x100] sm:$0xff]
        %v635 = vld [vmem:[#allocation2 + $0x108] sm:$0xff]
        %v636 = vld [vmem:[#allocation2 + $0x110] sm:$0xff]
        %v637 = vld [vmem:[#allocation2 + $0x118] sm:$0xff]
        %v638 = vld [vmem:[#allocation2 + $0x120] sm:$0xff]
        %v639 = vld [vmem:[#allocation2 + $0x128] sm:$0xff]
        %v640 = vld [vmem:[#allocation2 + $0x130] sm:$0xff]
        %v641 = vld [vmem:[#allocation2 + $0x138] sm:$0xff]
        %v642 = vld [vmem:[#allocation2 + $0x140] sm:$0xff]
        %v643 = vld [vmem:[#allocation2 + $0x148] sm:$0xff]
        %v644 = vld [vmem:[#allocation2 + $0x150] sm:$0xff]
        %v645 = vld [vmem:[#allocation2 + $0x158] sm:$0xff]
        %v646 = vld [vmem:[#allocation2 + $0x160] sm:$0xff]
        %v647 = vld [vmem:[#allocation2 + $0x168] sm:$0xff]
        %v648 = vld [vmem:[#allocation2 + $0x170] sm:$0xff]
        %v649 = vld [vmem:[#allocation2 + $0x178] sm:$0xff]
        %vm650 = vcmask 261120
        %v652 = vsel %vm650, %v354, 0
        %v655 = vsel %vm650, %v355, 0
        %v658 = vsel %vm650, %v356, 0
        %v661 = vsel %vm650, %v357, 0
        %663 = vmatprep.subr.mxu0 %v603
        %664 = vmatpush1.msra.mxu0 %v602
        %665 = vmatprep.subr.mxu0 %v615
        %666 = vmatpush1.msra.mxu0 %v614
        %667 = vmatprep.subr.mxu0 %v627
        %668 = vmatpush1.msra.mxu0 %v626
        %669 = vmatprep.subr.mxu0 %v639
        %670 = vmatpush1.msra.mxu0 %v638
        %671 = vmatprep.subr.mxu0 0.0
        %672 = vmatpush1.msra.mxu0 0.0
        %673 = vmatprep.subr.mxu0 0.0
        %674 = vmatpush1.msra.mxu0 0.0
        %675 = vmatprep.subr.mxu0 0.0
        %676 = vmatpush1.msra.mxu0 0.0
        %677 = vmatprep.subr.mxu0 0.0
        %678 = vmatpush1.msra.mxu0 0.0
        %679 = vmatprep.subr.mxu0 0.0
        %680 = vmatpush1.msra.mxu0 0.0
        %681 = vmatprep.subr.mxu0 0.0
        %682 = vmatpush1.msra.mxu0 0.0
        %683 = vmatprep.subr.mxu0 0.0
        %684 = vmatpush1.msra.mxu0 0.0
        %685 = vmatprep.subr.mxu0 0.0
        %686 = vmatpush1.msra.mxu0 0.0
        %687 = vmatprep.subr.mxu0 0.0
        %688 = vmatpush1.msra.mxu0 0.0
        %689 = vmatprep.subr.mxu0 0.0
        %690 = vmatpush1.msra.mxu0 0.0
        %691 = vmatprep.subr.mxu0 0.0
        %692 = vmatpush1.msra.mxu0 0.0
        %693 = vmatprep.subr.mxu0 0.0
        %694 = vmatpush1.msra.mxu0 0.0
        %695 = vmatprep.subr.mxu0 0.0
        %696 = vmatpush1.msra.mxu0 0.0
        %697 = vmatprep.subr.mxu0 0.0
        %698 = vmatpush1.msra.mxu0 0.0
        %699 = vmatprep.subr.mxu0 0.0
        %700 = vmatpush1.msra.mxu0 0.0
        %701 = vmatprep.subr.mxu0 0.0
        %702 = vmatpush1.msra.mxu0 0.0
        %703 = vmatprep.subr.mxu0 0.0
        %704 = vmatpush1.msra.mxu0 0.0
        %705 = vmatprep.subr.mxu0 0.0
        %706 = vmatpush1.msra.mxu0 0.0
        %707 = vmatprep.subr.mxu0 0.0
        %708 = vmatpush1.msra.mxu0 0.0
        %709 = vmatprep.subr.mxu0 0.0
        %710 = vmatpush1.msra.mxu0 0.0
        %711 = vmatprep.subr.mxu0 0.0
        %712 = vmatpush1.msra.mxu0 0.0
        %713 = vmatprep.subr.mxu0 0.0
        %714 = vmatpush1.msra.mxu0 0.0
        %715 = vmatprep.subr.mxu0 0.0
        %716 = vmatpush1.msra.mxu0 0.0
        %717 = vmatprep.subr.mxu0 0.0
        %718 = vmatpush1.msra.mxu0 0.0
        %719 = vmatprep.subr.mxu0 0.0
        %720 = vmatpush1.msra.mxu0 0.0
        %721 = vmatprep.subr.mxu0 0.0
        %722 = vmatpush1.msra.mxu0 0.0
        %723 = vmatprep.subr.mxu0 0.0
        %724 = vmatpush1.msra.mxu0 0.0
        %725 = vmatprep.subr.mxu0 0.0
        %726 = vmatpush1.msra.mxu0 0.0
        %727 = vmatprep.mubr.f32.mxu0 0.0
        %728 = vmatmul.mubr.f32.gmra.mrb[0].mxu0 %v652
        %v729 = vpop.f32.mrb[0].mxu0
        %v730 = vadd.f32 0.0, %v729
        %v731 = vpop.f32.mrb[0].mxu0
        %v732 = vadd.f32 0.0, %v731
        %733 = vmatprep.mubr.f32.mxu0 0.0
        %734 = vmatmul.mubr.f32.gmra.mrb[0].mxu0 %v655
        %v735 = vpop.f32.mrb[0].mxu0
        %v736 = vadd.f32 0.0, %v735
        %v737 = vpop.f32.mrb[0].mxu0
        %v738 = vadd.f32 0.0, %v737
        %739 = vmatprep.mubr.f32.mxu0 0.0
        %740 = vmatmul.mubr.f32.gmra.mrb[0].mxu0 %v658
        %v741 = vpop.f32.mrb[0].mxu0
        %v742 = vadd.f32 0.0, %v741
        %v743 = vpop.f32.mrb[0].mxu0
        %v744 = vadd.f32 0.0, %v743
        %745 = vmatprep.mubr.f32.mxu0 0.0
        %746 = vmatmul.mubr.f32.gmra.mrb[0].mxu0 %v661
        %v747 = vpop.f32.mrb[0].mxu0
        %v748 = vadd.f32 0.0, %v747
        %v749 = vpop.f32.mrb[0].mxu0
        %v750 = vadd.f32 0.0, %v749
        %751 = vdwg.mxu0
        %752 = vmatprep.subr.mxu0 %v605
        %753 = vmatpush1.msra.mxu0 %v604
        %754 = vmatprep.subr.mxu0 %v617
        %755 = vmatpush1.msra.mxu0 %v616
        %756 = vmatprep.subr.mxu0 %v629
        %757 = vmatpush1.msra.mxu0 %v628
        %758 = vmatprep.subr.mxu0 %v641
        %759 = vmatpush1.msra.mxu0 %v640
        %760 = vmatprep.subr.mxu0 0.0
        %761 = vmatpush1.msra.mxu0 0.0
        %762 = vmatprep.subr.mxu0 0.0
        %763 = vmatpush1.msra.mxu0 0.0
        %764 = vmatprep.subr.mxu0 0.0
        %765 = vmatpush1.msra.mxu0 0.0
        %766 = vmatprep.subr.mxu0 0.0
        %767 = vmatpush1.msra.mxu0 0.0
        %768 = vmatprep.subr.mxu0 0.0
        %769 = vmatpush1.msra.mxu0 0.0
        %770 = vmatprep.subr.mxu0 0.0
        %771 = vmatpush1.msra.mxu0 0.0
        %772 = vmatprep.subr.mxu0 0.0
        %773 = vmatpush1.msra.mxu0 0.0
        %774 = vmatprep.subr.mxu0 0.0
        %775 = vmatpush1.msra.mxu0 0.0
        %776 = vmatprep.subr.mxu0 0.0
        %777 = vmatpush1.msra.mxu0 0.0
        %778 = vmatprep.subr.mxu0 0.0
        %779 = vmatpush1.msra.mxu0 0.0
        %780 = vmatprep.subr.mxu0 0.0
        %781 = vmatpush1.msra.mxu0 0.0
        %782 = vmatprep.subr.mxu0 0.0
        %783 = vmatpush1.msra.mxu0 0.0
        %784 = vmatprep.subr.mxu0 0.0
        %785 = vmatpush1.msra.mxu0 0.0
        %786 = vmatprep.subr.mxu0 0.0
        %787 = vmatpush1.msra.mxu0 0.0
        %788 = vmatprep.subr.mxu0 0.0
        %789 = vmatpush1.msra.mxu0 0.0
        %790 = vmatprep.subr.mxu0 0.0
        %791 = vmatpush1.msra.mxu0 0.0
        %792 = vmatprep.subr.mxu0 0.0
        %793 = vmatpush1.msra.mxu0 0.0
        %794 = vmatprep.subr.mxu0 0.0
        %795 = vmatpush1.msra.mxu0 0.0
        %796 = vmatprep.subr.mxu0 0.0
        %797 = vmatpush1.msra.mxu0 0.0
        %798 = vmatprep.subr.mxu0 0.0
        %799 = vmatpush1.msra.mxu0 0.0
        %800 = vmatprep.subr.mxu0 0.0
        %801 = vmatpush1.msra.mxu0 0.0
        %802 = vmatprep.subr.mxu0 0.0
        %803 = vmatpush1.msra.mxu0 0.0
        %804 = vmatprep.subr.mxu0 0.0
        %805 = vmatpush1.msra.mxu0 0.0
        %806 = vmatprep.subr.mxu0 0.0
        %807 = vmatpush1.msra.mxu0 0.0
        %808 = vmatprep.subr.mxu0 0.0
        %809 = vmatpush1.msra.mxu0 0.0
        %810 = vmatprep.subr.mxu0 0.0
        %811 = vmatpush1.msra.mxu0 0.0
        %812 = vmatprep.subr.mxu0 0.0
        %813 = vmatpush1.msra.mxu0 0.0
        %814 = vmatprep.subr.mxu0 0.0
        %815 = vmatpush1.msra.mxu0 0.0
        %816 = vmatprep.mubr.f32.mxu0 0.0
        %817 = vmatmul.mubr.f32.gmra.mrb[0].mxu0 %v652
        %v818 = vpop.f32.mrb[0].mxu0
        %v819 = vadd.f32 0.0, %v818
        %v820 = vpop.f32.mrb[0].mxu0
        %v821 = vadd.f32 0.0, %v820
        %822 = vmatprep.mubr.f32.mxu0 0.0
        %823 = vmatmul.mubr.f32.gmra.mrb[0].mxu0 %v655
        %v824 = vpop.f32.mrb[0].mxu0
        %v825 = vadd.f32 0.0, %v824
        %v826 = vpop.f32.mrb[0].mxu0
        %v827 = vadd.f32 0.0, %v826
        %828 = vmatprep.mubr.f32.mxu0 0.0
        %829 = vmatmul.mubr.f32.gmra.mrb[0].mxu0 %v658
        %v830 = vpop.f32.mrb[0].mxu0
        %v831 = vadd.f32 0.0, %v830
        %v832 = vpop.f32.mrb[0].mxu0
        %v833 = vadd.f32 0.0, %v832
        %834 = vmatprep.mubr.f32.mxu0 0.0
        %835 = vmatmul.mubr.f32.gmra.mrb[0].mxu0 %v661
        %v836 = vpop.f32.mrb[0].mxu0
        %v837 = vadd.f32 0.0, %v836
        %v838 = vpop.f32.mrb[0].mxu0
        %v839 = vadd.f32 0.0, %v838
        %840 = vdwg.mxu0
        %841 = vmatprep.subr.mxu0 %v607
        %842 = vmatpush1.msra.mxu0 %v606
        %843 = vmatprep.subr.mxu0 %v619
        %844 = vmatpush1.msra.mxu0 %v618
        %845 = vmatprep.subr.mxu0 %v631
        %846 = vmatpush1.msra.mxu0 %v630
        %847 = vmatprep.subr.mxu0 %v643
        %848 = vmatpush1.msra.mxu0 %v642
        %849 = vmatprep.subr.mxu0 0.0
        %850 = vmatpush1.msra.mxu0 0.0
        %851 = vmatprep.subr.mxu0 0.0
        %852 = vmatpush1.msra.mxu0 0.0
        %853 = vmatprep.subr.mxu0 0.0
        %854 = vmatpush1.msra.mxu0 0.0
        %855 = vmatprep.subr.mxu0 0.0
        %856 = vmatpush1.msra.mxu0 0.0
        %857 = vmatprep.subr.mxu0 0.0
        %858 = vmatpush1.msra.mxu0 0.0
        %859 = vmatprep.subr.mxu0 0.0
        %860 = vmatpush1.msra.mxu0 0.0
        %861 = vmatprep.subr.mxu0 0.0
        %862 = vmatpush1.msra.mxu0 0.0
        %863 = vmatprep.subr.mxu0 0.0
        %864 = vmatpush1.msra.mxu0 0.0
        %865 = vmatprep.subr.mxu0 0.0
        %866 = vmatpush1.msra.mxu0 0.0
        %867 = vmatprep.subr.mxu0 0.0
        %868 = vmatpush1.msra.mxu0 0.0
        %869 = vmatprep.subr.mxu0 0.0
        %870 = vmatpush1.msra.mxu0 0.0
        %871 = vmatprep.subr.mxu0 0.0
        %872 = vmatpush1.msra.mxu0 0.0
        %873 = vmatprep.subr.mxu0 0.0
        %874 = vmatpush1.msra.mxu0 0.0
        %875 = vmatprep.subr.mxu0 0.0
        %876 = vmatpush1.msra.mxu0 0.0
        %877 = vmatprep.subr.mxu0 0.0
        %878 = vmatpush1.msra.mxu0 0.0
        %879 = vmatprep.subr.mxu0 0.0
        %880 = vmatpush1.msra.mxu0 0.0
        %881 = vmatprep.subr.mxu0 0.0
        %882 = vmatpush1.msra.mxu0 0.0
        %883 = vmatprep.subr.mxu0 0.0
        %884 = vmatpush1.msra.mxu0 0.0
        %885 = vmatprep.subr.mxu0 0.0
        %886 = vmatpush1.msra.mxu0 0.0
        %887 = vmatprep.subr.mxu0 0.0
        %888 = vmatpush1.msra.mxu0 0.0
        %889 = vmatprep.subr.mxu0 0.0
        %890 = vmatpush1.msra.mxu0 0.0
        %891 = vmatprep.subr.mxu0 0.0
        %892 = vmatpush1.msra.mxu0 0.0
        %893 = vmatprep.subr.mxu0 0.0
        %894 = vmatpush1.msra.mxu0 0.0
        %895 = vmatprep.subr.mxu0 0.0
        %896 = vmatpush1.msra.mxu0 0.0
        %897 = vmatprep.subr.mxu0 0.0
        %898 = vmatpush1.msra.mxu0 0.0
        %899 = vmatprep.subr.mxu0 0.0
        %900 = vmatpush1.msra.mxu0 0.0
        %901 = vmatprep.subr.mxu0 0.0
        %902 = vmatpush1.msra.mxu0 0.0
        %903 = vmatprep.subr.mxu0 0.0
        %904 = vmatpush1.msra.mxu0 0.0
        %905 = vmatprep.mubr.f32.mxu0 0.0
        %906 = vmatmul.mubr.f32.gmra.mrb[0].mxu0 %v652
        %v907 = vpop.f32.mrb[0].mxu0
        %v908 = vadd.f32 0.0, %v907
        %v909 = vpop.f32.mrb[0].mxu0
        %v910 = vadd.f32 0.0, %v909
        %911 = vmatprep.mubr.f32.mxu0 0.0
        %912 = vmatmul.mubr.f32.gmra.mrb[0].mxu0 %v655
        %v913 = vpop.f32.mrb[0].mxu0
        %v914 = vadd.f32 0.0, %v913
        %v915 = vpop.f32.mrb[0].mxu0
        %v916 = vadd.f32 0.0, %v915
        %917 = vmatprep.mubr.f32.mxu0 0.0
        %918 = vmatmul.mubr.f32.gmra.mrb[0].mxu0 %v658
        %v919 = vpop.f32.mrb[0].mxu0
        %v920 = vadd.f32 0.0, %v919
        %v921 = vpop.f32.mrb[0].mxu0
        %v922 = vadd.f32 0.0, %v921
        %923 = vmatprep.mubr.f32.mxu0 0.0
        %924 = vmatmul.mubr.f32.gmra.mrb[0].mxu0 %v661
        %v925 = vpop.f32.mrb[0].mxu0
        %v926 = vadd.f32 0.0, %v925
        %v927 = vpop.f32.mrb[0].mxu0
        %v928 = vadd.f32 0.0, %v927
        %929 = vdwg.mxu0
        %930 = vmatprep.subr.mxu0 %v609
        %931 = vmatpush1.msra.mxu0 %v608
        %932 = vmatprep.subr.mxu0 %v621
        %933 = vmatpush1.msra.mxu0 %v620
        %934 = vmatprep.subr.mxu0 %v633
        %935 = vmatpush1.msra.mxu0 %v632
        %936 = vmatprep.subr.mxu0 %v645
        %937 = vmatpush1.msra.mxu0 %v644
        %938 = vmatprep.subr.mxu0 0.0
        %939 = vmatpush1.msra.mxu0 0.0
        %940 = vmatprep.subr.mxu0 0.0
        %941 = vmatpush1.msra.mxu0 0.0
        %942 = vmatprep.subr.mxu0 0.0
        %943 = vmatpush1.msra.mxu0 0.0
        %944 = vmatprep.subr.mxu0 0.0
        %945 = vmatpush1.msra.mxu0 0.0
        %946 = vmatprep.subr.mxu0 0.0
        %947 = vmatpush1.msra.mxu0 0.0
        %948 = vmatprep.subr.mxu0 0.0
        %949 = vmatpush1.msra.mxu0 0.0
        %950 = vmatprep.subr.mxu0 0.0
        %951 = vmatpush1.msra.mxu0 0.0
        %952 = vmatprep.subr.mxu0 0.0
        %953 = vmatpush1.msra.mxu0 0.0
        %954 = vmatprep.subr.mxu0 0.0
        %955 = vmatpush1.msra.mxu0 0.0
        %956 = vmatprep.subr.mxu0 0.0
        %957 = vmatpush1.msra.mxu0 0.0
        %958 = vmatprep.subr.mxu0 0.0
        %959 = vmatpush1.msra.mxu0 0.0
        %960 = vmatprep.subr.mxu0 0.0
        %961 = vmatpush1.msra.mxu0 0.0
        %962 = vmatprep.subr.mxu0 0.0
        %963 = vmatpush1.msra.mxu0 0.0
        %964 = vmatprep.subr.mxu0 0.0
        %965 = vmatpush1.msra.mxu0 0.0
        %966 = vmatprep.subr.mxu0 0.0
        %967 = vmatpush1.msra.mxu0 0.0
        %968 = vmatprep.subr.mxu0 0.0
        %969 = vmatpush1.msra.mxu0 0.0
        %970 = vmatprep.subr.mxu0 0.0
        %971 = vmatpush1.msra.mxu0 0.0
        %972 = vmatprep.subr.mxu0 0.0
        %973 = vmatpush1.msra.mxu0 0.0
        %974 = vmatprep.subr.mxu0 0.0
        %975 = vmatpush1.msra.mxu0 0.0
        %976 = vmatprep.subr.mxu0 0.0
        %977 = vmatpush1.msra.mxu0 0.0
        %978 = vmatprep.subr.mxu0 0.0
        %979 = vmatpush1.msra.mxu0 0.0
        %980 = vmatprep.subr.mxu0 0.0
        %981 = vmatpush1.msra.mxu0 0.0
        %982 = vmatprep.subr.mxu0 0.0
        %983 = vmatpush1.msra.mxu0 0.0
        %984 = vmatprep.subr.mxu0 0.0
        %985 = vmatpush1.msra.mxu0 0.0
        %986 = vmatprep.subr.mxu0 0.0
        %987 = vmatpush1.msra.mxu0 0.0
        %988 = vmatprep.subr.mxu0 0.0
        %989 = vmatpush1.msra.mxu0 0.0
        %990 = vmatprep.subr.mxu0 0.0
        %991 = vmatpush1.msra.mxu0 0.0
        %992 = vmatprep.subr.mxu0 0.0
        %993 = vmatpush1.msra.mxu0 0.0
        %994 = vmatprep.mubr.f32.mxu0 0.0
        %995 = vmatmul.mubr.f32.gmra.mrb[0].mxu0 %v652
        %v996 = vpop.f32.mrb[0].mxu0
        %v997 = vadd.f32 0.0, %v996
        %v998 = vpop.f32.mrb[0].mxu0
        %v999 = vadd.f32 0.0, %v998
        %1000 = vmatprep.mubr.f32.mxu0 0.0
        %1001 = vmatmul.mubr.f32.gmra.mrb[0].mxu0 %v655
        %v1002 = vpop.f32.mrb[0].mxu0
        %v1003 = vadd.f32 0.0, %v1002
        %v1004 = vpop.f32.mrb[0].mxu0
        %v1005 = vadd.f32 0.0, %v1004
        %1006 = vmatprep.mubr.f32.mxu0 0.0
        %1007 = vmatmul.mubr.f32.gmra.mrb[0].mxu0 %v658
        %v1008 = vpop.f32.mrb[0].mxu0
        %v1009 = vadd.f32 0.0, %v1008
        %v1010 = vpop.f32.mrb[0].mxu0
        %v1011 = vadd.f32 0.0, %v1010
        %1012 = vmatprep.mubr.f32.mxu0 0.0
        %1013 = vmatmul.mubr.f32.gmra.mrb[0].mxu0 %v661
        %v1014 = vpop.f32.mrb[0].mxu0
        %v1015 = vadd.f32 0.0, %v1014
        %v1016 = vpop.f32.mrb[0].mxu0
        %v1017 = vadd.f32 0.0, %v1016
        %1018 = vdwg.mxu0
        %1019 = vmatprep.subr.mxu0 %v611
        %1020 = vmatpush1.msra.mxu0 %v610
        %1021 = vmatprep.subr.mxu0 %v623
        %1022 = vmatpush1.msra.mxu0 %v622
        %1023 = vmatprep.subr.mxu0 %v635
        %1024 = vmatpush1.msra.mxu0 %v634
        %1025 = vmatprep.subr.mxu0 %v647
        %1026 = vmatpush1.msra.mxu0 %v646
        %1027 = vmatprep.subr.mxu0 0.0
        %1028 = vmatpush1.msra.mxu0 0.0
        %1029 = vmatprep.subr.mxu0 0.0
        %1030 = vmatpush1.msra.mxu0 0.0
        %1031 = vmatprep.subr.mxu0 0.0
        %1032 = vmatpush1.msra.mxu0 0.0
        %1033 = vmatprep.subr.mxu0 0.0
        %1034 = vmatpush1.msra.mxu0 0.0
        %1035 = vmatprep.subr.mxu0 0.0
        %1036 = vmatpush1.msra.mxu0 0.0
        %1037 = vmatprep.subr.mxu0 0.0
        %1038 = vmatpush1.msra.mxu0 0.0
        %1039 = vmatprep.subr.mxu0 0.0
        %1040 = vmatpush1.msra.mxu0 0.0
        %1041 = vmatprep.subr.mxu0 0.0
        %1042 = vmatpush1.msra.mxu0 0.0
        %1043 = vmatprep.subr.mxu0 0.0
        %1044 = vmatpush1.msra.mxu0 0.0
        %1045 = vmatprep.subr.mxu0 0.0
        %1046 = vmatpush1.msra.mxu0 0.0
        %1047 = vmatprep.subr.mxu0 0.0
        %1048 = vmatpush1.msra.mxu0 0.0
        %1049 = vmatprep.subr.mxu0 0.0
        %1050 = vmatpush1.msra.mxu0 0.0
        %1051 = vmatprep.subr.mxu0 0.0
        %1052 = vmatpush1.msra.mxu0 0.0
        %1053 = vmatprep.subr.mxu0 0.0
        %1054 = vmatpush1.msra.mxu0 0.0
        %1055 = vmatprep.subr.mxu0 0.0
        %1056 = vmatpush1.msra.mxu0 0.0
        %1057 = vmatprep.subr.mxu0 0.0
        %1058 = vmatpush1.msra.mxu0 0.0
        %1059 = vmatprep.subr.mxu0 0.0
        %1060 = vmatpush1.msra.mxu0 0.0
        %1061 = vmatprep.subr.mxu0 0.0
        %1062 = vmatpush1.msra.mxu0 0.0
        %1063 = vmatprep.subr.mxu0 0.0
        %1064 = vmatpush1.msra.mxu0 0.0
        %1065 = vmatprep.subr.mxu0 0.0
        %1066 = vmatpush1.msra.mxu0 0.0
        %1067 = vmatprep.subr.mxu0 0.0
        %1068 = vmatpush1.msra.mxu0 0.0
        %1069 = vmatprep.subr.mxu0 0.0
        %1070 = vmatpush1.msra.mxu0 0.0
        %1071 = vmatprep.subr.mxu0 0.0
        %1072 = vmatpush1.msra.mxu0 0.0
        %1073 = vmatprep.subr.mxu0 0.0
        %1074 = vmatpush1.msra.mxu0 0.0
        %1075 = vmatprep.subr.mxu0 0.0
        %1076 = vmatpush1.msra.mxu0 0.0
        %1077 = vmatprep.subr.mxu0 0.0
        %1078 = vmatpush1.msra.mxu0 0.0
        %1079 = vmatprep.subr.mxu0 0.0
        %1080 = vmatpush1.msra.mxu0 0.0
        %1081 = vmatprep.subr.mxu0 0.0
        %1082 = vmatpush1.msra.mxu0 0.0
        %1083 = vmatprep.mubr.f32.mxu0 0.0
        %1084 = vmatmul.mubr.f32.gmra.mrb[0].mxu0 %v652
        %v1085 = vpop.f32.mrb[0].mxu0
        %v1086 = vadd.f32 0.0, %v1085
        %v1087 = vpop.f32.mrb[0].mxu0
        %v1088 = vadd.f32 0.0, %v1087
        %1089 = vmatprep.mubr.f32.mxu0 0.0
        %1090 = vmatmul.mubr.f32.gmra.mrb[0].mxu0 %v655
        %v1091 = vpop.f32.mrb[0].mxu0
        %v1092 = vadd.f32 0.0, %v1091
        %v1093 = vpop.f32.mrb[0].mxu0
        %v1094 = vadd.f32 0.0, %v1093
        %1095 = vmatprep.mubr.f32.mxu0 0.0
        %1096 = vmatmul.mubr.f32.gmra.mrb[0].mxu0 %v658
        %v1097 = vpop.f32.mrb[0].mxu0
        %v1098 = vadd.f32 0.0, %v1097
        %v1099 = vpop.f32.mrb[0].mxu0
        %v1100 = vadd.f32 0.0, %v1099
        %1101 = vmatprep.mubr.f32.mxu0 0.0
        %1102 = vmatmul.mubr.f32.gmra.mrb[0].mxu0 %v661
        %v1103 = vpop.f32.mrb[0].mxu0
        %v1104 = vadd.f32 0.0, %v1103
        %v1105 = vpop.f32.mrb[0].mxu0
        %v1106 = vadd.f32 0.0, %v1105
        %1107 = vdwg.mxu0
        %1108 = vmatprep.subr.mxu0 %v613
        %1109 = vmatpush1.msra.mxu0 %v612
        %1110 = vmatprep.subr.mxu0 %v625
        %1111 = vmatpush1.msra.mxu0 %v624
        %1112 = vmatprep.subr.mxu0 %v637
        %1113 = vmatpush1.msra.mxu0 %v636
        %1114 = vmatprep.subr.mxu0 %v649
        %1115 = vmatpush1.msra.mxu0 %v648
        %1116 = vmatprep.subr.mxu0 0.0
        %1117 = vmatpush1.msra.mxu0 0.0
        %1118 = vmatprep.subr.mxu0 0.0
        %1119 = vmatpush1.msra.mxu0 0.0
        %1120 = vmatprep.subr.mxu0 0.0
        %1121 = vmatpush1.msra.mxu0 0.0
        %1122 = vmatprep.subr.mxu0 0.0
        %1123 = vmatpush1.msra.mxu0 0.0
        %1124 = vmatprep.subr.mxu0 0.0
        %1125 = vmatpush1.msra.mxu0 0.0
        %1126 = vmatprep.subr.mxu0 0.0
        %1127 = vmatpush1.msra.mxu0 0.0
        %1128 = vmatprep.subr.mxu0 0.0
        %1129 = vmatpush1.msra.mxu0 0.0
        %1130 = vmatprep.subr.mxu0 0.0
        %1131 = vmatpush1.msra.mxu0 0.0
        %1132 = vmatprep.subr.mxu0 0.0
        %1133 = vmatpush1.msra.mxu0 0.0
        %1134 = vmatprep.subr.mxu0 0.0
        %1135 = vmatpush1.msra.mxu0 0.0
        %1136 = vmatprep.subr.mxu0 0.0
        %1137 = vmatpush1.msra.mxu0 0.0
        %1138 = vmatprep.subr.mxu0 0.0
        %1139 = vmatpush1.msra.mxu0 0.0
        %1140 = vmatprep.subr.mxu0 0.0
        %1141 = vmatpush1.msra.mxu0 0.0
        %1142 = vmatprep.subr.mxu0 0.0
        %1143 = vmatpush1.msra.mxu0 0.0
        %1144 = vmatprep.subr.mxu0 0.0
        %1145 = vmatpush1.msra.mxu0 0.0
        %1146 = vmatprep.subr.mxu0 0.0
        %1147 = vmatpush1.msra.mxu0 0.0
        %1148 = vmatprep.subr.mxu0 0.0
        %1149 = vmatpush1.msra.mxu0 0.0
        %1150 = vmatprep.subr.mxu0 0.0
        %1151 = vmatpush1.msra.mxu0 0.0
        %1152 = vmatprep.subr.mxu0 0.0
        %1153 = vmatpush1.msra.mxu0 0.0
        %1154 = vmatprep.subr.mxu0 0.0
        %1155 = vmatpush1.msra.mxu0 0.0
        %1156 = vmatprep.subr.mxu0 0.0
        %1157 = vmatpush1.msra.mxu0 0.0
        %1158 = vmatprep.subr.mxu0 0.0
        %1159 = vmatpush1.msra.mxu0 0.0
        %1160 = vmatprep.subr.mxu0 0.0
        %1161 = vmatpush1.msra.mxu0 0.0
        %1162 = vmatprep.subr.mxu0 0.0
        %1163 = vmatpush1.msra.mxu0 0.0
        %1164 = vmatprep.subr.mxu0 0.0
        %1165 = vmatpush1.msra.mxu0 0.0
        %1166 = vmatprep.subr.mxu0 0.0
        %1167 = vmatpush1.msra.mxu0 0.0
        %1168 = vmatprep.subr.mxu0 0.0
        %1169 = vmatpush1.msra.mxu0 0.0
        %1170 = vmatprep.subr.mxu0 0.0
        %1171 = vmatpush1.msra.mxu0 0.0
        %1172 = vmatprep.mubr.f32.mxu0 0.0
        %1173 = vmatmul.mubr.f32.gmra.mrb[0].mxu0 %v652
        %v1174 = vpop.f32.mrb[0].mxu0
        %v1175 = vadd.f32 0.0, %v1174
        %v1176 = vpop.f32.mrb[0].mxu0
        %v1177 = vadd.f32 0.0, %v1176
        %1178 = vmatprep.mubr.f32.mxu0 0.0
        %1179 = vmatmul.mubr.f32.gmra.mrb[0].mxu0 %v655
        %v1180 = vpop.f32.mrb[0].mxu0
        %v1181 = vadd.f32 0.0, %v1180
        %v1182 = vpop.f32.mrb[0].mxu0
        %v1183 = vadd.f32 0.0, %v1182
        %1184 = vmatprep.mubr.f32.mxu0 0.0
        %1185 = vmatmul.mubr.f32.gmra.mrb[0].mxu0 %v658
        %v1186 = vpop.f32.mrb[0].mxu0
        %v1187 = vadd.f32 0.0, %v1186
        %v1188 = vpop.f32.mrb[0].mxu0
        %v1189 = vadd.f32 0.0, %v1188
        %1190 = vmatprep.mubr.f32.mxu0 0.0
        %1191 = vmatmul.mubr.f32.gmra.mrb[0].mxu0 %v661
        %v1192 = vpop.f32.mrb[0].mxu0
        %v1193 = vadd.f32 0.0, %v1192
        %v1194 = vpop.f32.mrb[0].mxu0
        %v1195 = vadd.f32 0.0, %v1194
        %1196 = vdwg.mxu0
        %v1197 = vadd.f32 %v730, %v366
        %v1198 = vadd.f32 %v732, %v366
        %v1199 = vadd.f32 %v736, %v371
        %v1200 = vadd.f32 %v738, %v371
        %v1201 = vadd.f32 %v742, %v376
        %v1202 = vadd.f32 %v744, %v376
        %v1203 = vadd.f32 %v748, %v381
        %v1204 = vadd.f32 %v750, %v381
        %v1205 = vxor.u32 %v1197, 2147483648
        %v1206 = vxor.u32 %v1198, 2147483648
        %v1207 = vxor.u32 %v1199, 2147483648
        %v1208 = vxor.u32 %v1200, 2147483648
        %v1209 = vxor.u32 %v1201, 2147483648
        %v1210 = vxor.u32 %v1202, 2147483648
        %v1211 = vxor.u32 %v1203, 2147483648
        %v1212 = vxor.u32 %v1204, 2147483648
        %v1213 = vmul.f32 %v1205, 1.442695
        %v1214 = vpow.pop %v1213
        %v1215 = vmul.f32 %v1206, 1.442695
        %v1216 = vpow.pop %v1215
        %v1217 = vmul.f32 %v1207, 1.442695
        %v1218 = vpow.pop %v1217
        %v1219 = vmul.f32 %v1208, 1.442695
        %v1220 = vpow.pop %v1219
        %v1221 = vmul.f32 %v1209, 1.442695
        %v1222 = vpow.pop %v1221
        %v1223 = vmul.f32 %v1210, 1.442695
        %v1224 = vpow.pop %v1223
        %v1225 = vmul.f32 %v1211, 1.442695
        %v1226 = vpow.pop %v1225
        %v1227 = vmul.f32 %v1212, 1.442695
        %v1228 = vpow.pop %v1227
        %v1229 = vadd.f32 %v1214, 1.0
        %v1230 = vadd.f32 %v1216, 1.0
        %v1231 = vadd.f32 %v1218, 1.0
        %v1232 = vadd.f32 %v1220, 1.0
        %v1233 = vadd.f32 %v1222, 1.0
        %v1234 = vadd.f32 %v1224, 1.0
        %v1235 = vadd.f32 %v1226, 1.0
        %v1236 = vadd.f32 %v1228, 1.0
        %v1237 = vrcp.pop %v1229
        %v1238 = vmul.f32 1.0, %v1237
        %v1239 = vrcp.pop %v1230
        %v1240 = vmul.f32 1.0, %v1239
        %v1241 = vrcp.pop %v1231
        %v1242 = vmul.f32 1.0, %v1241
        %v1243 = vrcp.pop %v1232
        %v1244 = vmul.f32 1.0, %v1243
        %v1245 = vrcp.pop %v1233
        %v1246 = vmul.f32 1.0, %v1245
        %v1247 = vrcp.pop %v1234
        %v1248 = vmul.f32 1.0, %v1247
        %v1249 = vrcp.pop %v1235
        %v1250 = vmul.f32 1.0, %v1249
        %v1251 = vrcp.pop %v1236
        %v1252 = vmul.f32 1.0, %v1251
        %v1253 = vmul.f32 %v1238, %v390
        %v1254 = vmul.f32 %v1240, %v390
        %v1255 = vmul.f32 %v1242, %v395
        %v1256 = vmul.f32 %v1244, %v395
        %v1257 = vmul.f32 %v1246, %v400
        %v1258 = vmul.f32 %v1248, %v400
        %v1259 = vmul.f32 %v1250, %v405
        %v1260 = vmul.f32 %v1252, %v405
        %v1261 = vadd.f32 %v1253, %v1255
        %v1262 = vadd.f32 %v1261, %v1257
        %v1263 = vadd.f32 %v1262, %v1259
        %v1264 = vrot.slane %v1263, 4
        %v1265 = vadd.f32 %v1263, %v1264
        %v1266 = vrot.slane %v1265, 2
        %v1267 = vadd.f32 %v1265, %v1266
        %v1268 = vrot.slane %v1267, 1
        %v1269 = vadd.f32 %v1267, %v1268
        %v1270 = vadd.f32 %v1254, %v1256
        %v1271 = vadd.f32 %v1270, %v1258
        %v1272 = vadd.f32 %v1271, %v1260
        %v1273 = vrot.slane %v1272, 4
        %v1274 = vadd.f32 %v1272, %v1273
        %v1275 = vrot.slane %v1274, 2
        %v1276 = vadd.f32 %v1274, %v1275
        %v1277 = vrot.slane %v1276, 1
        %v1278 = vadd.f32 %v1276, %v1277
        %v1279 = vstv %s358
        %v1280 = vadd.f32 %v1269, %v1279
        %v1281 = vadd.f32 %v1278, %v1279
        %v1282 = vxor.u32 %v1280, 2147483648
        %v1283 = vxor.u32 %v1281, 2147483648
        %v1284 = vmul.f32 %v1282, 1.442695
        %v1285 = vpow.pop %v1284
        %v1286 = vmul.f32 %v1283, 1.442695
        %v1287 = vpow.pop %v1286
        %v1288 = vadd.f32 %v1285, 1.0
        %v1289 = vadd.f32 %v1287, 1.0
        %v1290 = vrcp.pop %v1288
        %v1291 = vmul.f32 1.0, %v1290
        %v1292 = vrcp.pop %v1289
        %v1293 = vmul.f32 1.0, %v1292
        %v1294 = vadd.f32 %v819, %v366
        %v1295 = vadd.f32 %v821, %v366
        %v1296 = vadd.f32 %v825, %v371
        %v1297 = vadd.f32 %v827, %v371
        %v1298 = vadd.f32 %v831, %v376
        %v1299 = vadd.f32 %v833, %v376
        %v1300 = vadd.f32 %v837, %v381
        %v1301 = vadd.f32 %v839, %v381
        %v1302 = vxor.u32 %v1294, 2147483648
        %v1303 = vxor.u32 %v1295, 2147483648
        %v1304 = vxor.u32 %v1296, 2147483648
        %v1305 = vxor.u32 %v1297, 2147483648
        %v1306 = vxor.u32 %v1298, 2147483648
        %v1307 = vxor.u32 %v1299, 2147483648
        %v1308 = vxor.u32 %v1300, 2147483648
        %v1309 = vxor.u32 %v1301, 2147483648
        %v1310 = vmul.f32 %v1302, 1.442695
        %v1311 = vpow.pop %v1310
        %v1312 = vmul.f32 %v1303, 1.442695
        %v1313 = vpow.pop %v1312
        %v1314 = vmul.f32 %v1304, 1.442695
        %v1315 = vpow.pop %v1314
        %v1316 = vmul.f32 %v1305, 1.442695
        %v1317 = vpow.pop %v1316
        %v1318 = vmul.f32 %v1306, 1.442695
        %v1319 = vpow.pop %v1318
        %v1320 = vmul.f32 %v1307, 1.442695
        %v1321 = vpow.pop %v1320
        %v1322 = vmul.f32 %v1308, 1.442695
        %v1323 = vpow.pop %v1322
        %v1324 = vmul.f32 %v1309, 1.442695
        %v1325 = vpow.pop %v1324
        %v1326 = vadd.f32 %v1311, 1.0
        %v1327 = vadd.f32 %v1313, 1.0
        %v1328 = vadd.f32 %v1315, 1.0
        %v1329 = vadd.f32 %v1317, 1.0
        %v1330 = vadd.f32 %v1319, 1.0
        %v1331 = vadd.f32 %v1321, 1.0
        %v1332 = vadd.f32 %v1323, 1.0
        %v1333 = vadd.f32 %v1325, 1.0
        %v1334 = vrcp.pop %v1326
        %v1335 = vmul.f32 1.0, %v1334
        %v1336 = vrcp.pop %v1327
        %v1337 = vmul.f32 1.0, %v1336
        %v1338 = vrcp.pop %v1328
        %v1339 = vmul.f32 1.0, %v1338
        %v1340 = vrcp.pop %v1329
        %v1341 = vmul.f32 1.0, %v1340
        %v1342 = vrcp.pop %v1330
        %v1343 = vmul.f32 1.0, %v1342
        %v1344 = vrcp.pop %v1331
        %v1345 = vmul.f32 1.0, %v1344
        %v1346 = vrcp.pop %v1332
        %v1347 = vmul.f32 1.0, %v1346
        %v1348 = vrcp.pop %v1333
        %v1349 = vmul.f32 1.0, %v1348
        %v1350 = vmul.f32 %v1335, %v390
        %v1351 = vmul.f32 %v1337, %v390
        %v1352 = vmul.f32 %v1339, %v395
        %v1353 = vmul.f32 %v1341, %v395
        %v1354 = vmul.f32 %v1343, %v400
        %v1355 = vmul.f32 %v1345, %v400
        %v1356 = vmul.f32 %v1347, %v405
        %v1357 = vmul.f32 %v1349, %v405
        %v1358 = vadd.f32 %v1350, %v1352
        %v1359 = vadd.f32 %v1358, %v1354
        %v1360 = vadd.f32 %v1359, %v1356
        %v1361 = vrot.slane %v1360, 4
        %v1362 = vadd.f32 %v1360, %v1361
        %v1363 = vrot.slane %v1362, 2
        %v1364 = vadd.f32 %v1362, %v1363
        %v1365 = vrot.slane %v1364, 1
        %v1366 = vadd.f32 %v1364, %v1365
        %v1367 = vadd.f32 %v1351, %v1353
        %v1368 = vadd.f32 %v1367, %v1355
        %v1369 = vadd.f32 %v1368, %v1357
        %v1370 = vrot.slane %v1369, 4
        %v1371 = vadd.f32 %v1369, %v1370
        %v1372 = vrot.slane %v1371, 2
        %v1373 = vadd.f32 %v1371, %v1372
        %v1374 = vrot.slane %v1373, 1
        %v1375 = vadd.f32 %v1373, %v1374
        %v1376 = vadd.f32 %v1366, %v1279
        %v1377 = vadd.f32 %v1375, %v1279
        %v1378 = vxor.u32 %v1376, 2147483648
        %v1379 = vxor.u32 %v1377, 2147483648
        %v1380 = vmul.f32 %v1378, 1.442695
        %v1381 = vpow.pop %v1380
        %v1382 = vmul.f32 %v1379, 1.442695
        %v1383 = vpow.pop %v1382
        %v1384 = vadd.f32 %v1381, 1.0
        %v1385 = vadd.f32 %v1383, 1.0
        %v1386 = vrcp.pop %v1384
        %v1387 = vmul.f32 1.0, %v1386
        %v1388 = vrcp.pop %v1385
        %v1389 = vmul.f32 1.0, %v1388
        %v1390 = vadd.f32 %v908, %v366
        %v1391 = vadd.f32 %v910, %v366
        %v1392 = vadd.f32 %v914, %v371
        %v1393 = vadd.f32 %v916, %v371
        %v1394 = vadd.f32 %v920, %v376
        %v1395 = vadd.f32 %v922, %v376
        %v1396 = vadd.f32 %v926, %v381
        %v1397 = vadd.f32 %v928, %v381
        %v1398 = vxor.u32 %v1390, 2147483648
        %v1399 = vxor.u32 %v1391, 2147483648
        %v1400 = vxor.u32 %v1392, 2147483648
        %v1401 = vxor.u32 %v1393, 2147483648
        %v1402 = vxor.u32 %v1394, 2147483648
        %v1403 = vxor.u32 %v1395, 2147483648
        %v1404 = vxor.u32 %v1396, 2147483648
        %v1405 = vxor.u32 %v1397, 2147483648
        %v1406 = vmul.f32 %v1398, 1.442695
        %v1407 = vpow.pop %v1406
        %v1408 = vmul.f32 %v1399, 1.442695
        %v1409 = vpow.pop %v1408
        %v1410 = vmul.f32 %v1400, 1.442695
        %v1411 = vpow.pop %v1410
        %v1412 = vmul.f32 %v1401, 1.442695
        %v1413 = vpow.pop %v1412
        %v1414 = vmul.f32 %v1402, 1.442695
        %v1415 = vpow.pop %v1414
        %v1416 = vmul.f32 %v1403, 1.442695
        %v1417 = vpow.pop %v1416
        %v1418 = vmul.f32 %v1404, 1.442695
        %v1419 = vpow.pop %v1418
        %v1420 = vmul.f32 %v1405, 1.442695
        %v1421 = vpow.pop %v1420
        %v1422 = vadd.f32 %v1407, 1.0
        %v1423 = vadd.f32 %v1409, 1.0
        %v1424 = vadd.f32 %v1411, 1.0
        %v1425 = vadd.f32 %v1413, 1.0
        %v1426 = vadd.f32 %v1415, 1.0
        %v1427 = vadd.f32 %v1417, 1.0
        %v1428 = vadd.f32 %v1419, 1.0
        %v1429 = vadd.f32 %v1421, 1.0
        %v1430 = vrcp.pop %v1422
        %v1431 = vmul.f32 1.0, %v1430
        %v1432 = vrcp.pop %v1423
        %v1433 = vmul.f32 1.0, %v1432
        %v1434 = vrcp.pop %v1424
        %v1435 = vmul.f32 1.0, %v1434
        %v1436 = vrcp.pop %v1425
        %v1437 = vmul.f32 1.0, %v1436
        %v1438 = vrcp.pop %v1426
        %v1439 = vmul.f32 1.0, %v1438
        %v1440 = vrcp.pop %v1427
        %v1441 = vmul.f32 1.0, %v1440
        %v1442 = vrcp.pop %v1428
        %v1443 = vmul.f32 1.0, %v1442
        %v1444 = vrcp.pop %v1429
        %v1445 = vmul.f32 1.0, %v1444
        %v1446 = vmul.f32 %v1431, %v390
        %v1447 = vmul.f32 %v1433, %v390
        %v1448 = vmul.f32 %v1435, %v395
        %v1449 = vmul.f32 %v1437, %v395
        %v1450 = vmul.f32 %v1439, %v400
        %v1451 = vmul.f32 %v1441, %v400
        %v1452 = vmul.f32 %v1443, %v405
        %v1453 = vmul.f32 %v1445, %v405
        %v1454 = vadd.f32 %v1446, %v1448
        %v1455 = vadd.f32 %v1454, %v1450
        %v1456 = vadd.f32 %v1455, %v1452
        %v1457 = vrot.slane %v1456, 4
        %v1458 = vadd.f32 %v1456, %v1457
        %v1459 = vrot.slane %v1458, 2
        %v1460 = vadd.f32 %v1458, %v1459
        %v1461 = vrot.slane %v1460, 1
        %v1462 = vadd.f32 %v1460, %v1461
        %v1463 = vadd.f32 %v1447, %v1449
        %v1464 = vadd.f32 %v1463, %v1451
        %v1465 = vadd.f32 %v1464, %v1453
        %v1466 = vrot.slane %v1465, 4
        %v1467 = vadd.f32 %v1465, %v1466
        %v1468 = vrot.slane %v1467, 2
        %v1469 = vadd.f32 %v1467, %v1468
        %v1470 = vrot.slane %v1469, 1
        %v1471 = vadd.f32 %v1469, %v1470
        %v1472 = vadd.f32 %v1462, %v1279
        %v1473 = vadd.f32 %v1471, %v1279
        %v1474 = vxor.u32 %v1472, 2147483648
        %v1475 = vxor.u32 %v1473, 2147483648
        %v1476 = vmul.f32 %v1474, 1.442695
        %v1477 = vpow.pop %v1476
        %v1478 = vmul.f32 %v1475, 1.442695
        %v1479 = vpow.pop %v1478
        %v1480 = vadd.f32 %v1477, 1.0
        %v1481 = vadd.f32 %v1479, 1.0
        %v1482 = vrcp.pop %v1480
        %v1483 = vmul.f32 1.0, %v1482
        %v1484 = vrcp.pop %v1481
        %v1485 = vmul.f32 1.0, %v1484
        %v1486 = vadd.f32 %v997, %v366
        %v1487 = vadd.f32 %v999, %v366
        %v1488 = vadd.f32 %v1003, %v371
        %v1489 = vadd.f32 %v1005, %v371
        %v1490 = vadd.f32 %v1009, %v376
        %v1491 = vadd.f32 %v1011, %v376
        %v1492 = vadd.f32 %v1015, %v381
        %v1493 = vadd.f32 %v1017, %v381
        %v1494 = vxor.u32 %v1486, 2147483648
        %v1495 = vxor.u32 %v1487, 2147483648
        %v1496 = vxor.u32 %v1488, 2147483648
        %v1497 = vxor.u32 %v1489, 2147483648
        %v1498 = vxor.u32 %v1490, 2147483648
        %v1499 = vxor.u32 %v1491, 2147483648
        %v1500 = vxor.u32 %v1492, 2147483648
        %v1501 = vxor.u32 %v1493, 2147483648
        %v1502 = vmul.f32 %v1494, 1.442695
        %v1503 = vpow.pop %v1502
        %v1504 = vmul.f32 %v1495, 1.442695
        %v1505 = vpow.pop %v1504
        %v1506 = vmul.f32 %v1496, 1.442695
        %v1507 = vpow.pop %v1506
        %v1508 = vmul.f32 %v1497, 1.442695
        %v1509 = vpow.pop %v1508
        %v1510 = vmul.f32 %v1498, 1.442695
        %v1511 = vpow.pop %v1510
        %v1512 = vmul.f32 %v1499, 1.442695
        %v1513 = vpow.pop %v1512
        %v1514 = vmul.f32 %v1500, 1.442695
        %v1515 = vpow.pop %v1514
        %v1516 = vmul.f32 %v1501, 1.442695
        %v1517 = vpow.pop %v1516
        %v1518 = vadd.f32 %v1503, 1.0
        %v1519 = vadd.f32 %v1505, 1.0
        %v1520 = vadd.f32 %v1507, 1.0
        %v1521 = vadd.f32 %v1509, 1.0
        %v1522 = vadd.f32 %v1511, 1.0
        %v1523 = vadd.f32 %v1513, 1.0
        %v1524 = vadd.f32 %v1515, 1.0
        %v1525 = vadd.f32 %v1517, 1.0
        %v1526 = vrcp.pop %v1518
        %v1527 = vmul.f32 1.0, %v1526
        %v1528 = vrcp.pop %v1519
        %v1529 = vmul.f32 1.0, %v1528
        %v1530 = vrcp.pop %v1520
        %v1531 = vmul.f32 1.0, %v1530
        %v1532 = vrcp.pop %v1521
        %v1533 = vmul.f32 1.0, %v1532
        %v1534 = vrcp.pop %v1522
        %v1535 = vmul.f32 1.0, %v1534
        %v1536 = vrcp.pop %v1523
        %v1537 = vmul.f32 1.0, %v1536
        %v1538 = vrcp.pop %v1524
        %v1539 = vmul.f32 1.0, %v1538
        %v1540 = vrcp.pop %v1525
        %v1541 = vmul.f32 1.0, %v1540
        %v1542 = vmul.f32 %v1527, %v390
        %v1543 = vmul.f32 %v1529, %v390
        %v1544 = vmul.f32 %v1531, %v395
        %v1545 = vmul.f32 %v1533, %v395
        %v1546 = vmul.f32 %v1535, %v400
        %v1547 = vmul.f32 %v1537, %v400
        %v1548 = vmul.f32 %v1539, %v405
        %v1549 = vmul.f32 %v1541, %v405
        %v1550 = vadd.f32 %v1542, %v1544
        %v1551 = vadd.f32 %v1550, %v1546
        %v1552 = vadd.f32 %v1551, %v1548
        %v1553 = vrot.slane %v1552, 4
        %v1554 = vadd.f32 %v1552, %v1553
        %v1555 = vrot.slane %v1554, 2
        %v1556 = vadd.f32 %v1554, %v1555
        %v1557 = vrot.slane %v1556, 1
        %v1558 = vadd.f32 %v1556, %v1557
        %v1559 = vadd.f32 %v1543, %v1545
        %v1560 = vadd.f32 %v1559, %v1547
        %v1561 = vadd.f32 %v1560, %v1549
        %v1562 = vrot.slane %v1561, 4
        %v1563 = vadd.f32 %v1561, %v1562
        %v1564 = vrot.slane %v1563, 2
        %v1565 = vadd.f32 %v1563, %v1564
        %v1566 = vrot.slane %v1565, 1
        %v1567 = vadd.f32 %v1565, %v1566
        %v1568 = vadd.f32 %v1558, %v1279
        %v1569 = vadd.f32 %v1567, %v1279
        %v1570 = vxor.u32 %v1568, 2147483648
        %v1571 = vxor.u32 %v1569, 2147483648
        %v1572 = vmul.f32 %v1570, 1.442695
        %v1573 = vpow.pop %v1572
        %v1574 = vmul.f32 %v1571, 1.442695
        %v1575 = vpow.pop %v1574
        %v1576 = vadd.f32 %v1573, 1.0
        %v1577 = vadd.f32 %v1575, 1.0
        %v1578 = vrcp.pop %v1576
        %v1579 = vmul.f32 1.0, %v1578
        %v1580 = vrcp.pop %v1577
        %v1581 = vmul.f32 1.0, %v1580
        %v1582 = vadd.f32 %v1086, %v366
        %v1583 = vadd.f32 %v1088, %v366
        %v1584 = vadd.f32 %v1092, %v371
        %v1585 = vadd.f32 %v1094, %v371
        %v1586 = vadd.f32 %v1098, %v376
        %v1587 = vadd.f32 %v1100, %v376
        %v1588 = vadd.f32 %v1104, %v381
        %v1589 = vadd.f32 %v1106, %v381
        %v1590 = vxor.u32 %v1582, 2147483648
        %v1591 = vxor.u32 %v1583, 2147483648
        %v1592 = vxor.u32 %v1584, 2147483648
        %v1593 = vxor.u32 %v1585, 2147483648
        %v1594 = vxor.u32 %v1586, 2147483648
        %v1595 = vxor.u32 %v1587, 2147483648
        %v1596 = vxor.u32 %v1588, 2147483648
        %v1597 = vxor.u32 %v1589, 2147483648
        %v1598 = vmul.f32 %v1590, 1.442695
        %v1599 = vpow.pop %v1598
        %v1600 = vmul.f32 %v1591, 1.442695
        %v1601 = vpow.pop %v1600
        %v1602 = vmul.f32 %v1592, 1.442695
        %v1603 = vpow.pop %v1602
        %v1604 = vmul.f32 %v1593, 1.442695
        %v1605 = vpow.pop %v1604
        %v1606 = vmul.f32 %v1594, 1.442695
        %v1607 = vpow.pop %v1606
        %v1608 = vmul.f32 %v1595, 1.442695
        %v1609 = vpow.pop %v1608
        %v1610 = vmul.f32 %v1596, 1.442695
        %v1611 = vpow.pop %v1610
        %v1612 = vmul.f32 %v1597, 1.442695
        %v1613 = vpow.pop %v1612
        %v1614 = vadd.f32 %v1599, 1.0
        %v1615 = vadd.f32 %v1601, 1.0
        %v1616 = vadd.f32 %v1603, 1.0
        %v1617 = vadd.f32 %v1605, 1.0
        %v1618 = vadd.f32 %v1607, 1.0
        %v1619 = vadd.f32 %v1609, 1.0
        %v1620 = vadd.f32 %v1611, 1.0
        %v1621 = vadd.f32 %v1613, 1.0
        %v1622 = vrcp.pop %v1614
        %v1623 = vmul.f32 1.0, %v1622
        %v1624 = vrcp.pop %v1615
        %v1625 = vmul.f32 1.0, %v1624
        %v1626 = vrcp.pop %v1616
        %v1627 = vmul.f32 1.0, %v1626
        %v1628 = vrcp.pop %v1617
        %v1629 = vmul.f32 1.0, %v1628
        %v1630 = vrcp.pop %v1618
        %v1631 = vmul.f32 1.0, %v1630
        %v1632 = vrcp.pop %v1619
        %v1633 = vmul.f32 1.0, %v1632
        %v1634 = vrcp.pop %v1620
        %v1635 = vmul.f32 1.0, %v1634
        %v1636 = vrcp.pop %v1621
        %v1637 = vmul.f32 1.0, %v1636
        %v1638 = vmul.f32 %v1623, %v390
        %v1639 = vmul.f32 %v1625, %v390
        %v1640 = vmul.f32 %v1627, %v395
        %v1641 = vmul.f32 %v1629, %v395
        %v1642 = vmul.f32 %v1631, %v400
        %v1643 = vmul.f32 %v1633, %v400
        %v1644 = vmul.f32 %v1635, %v405
        %v1645 = vmul.f32 %v1637, %v405
        %v1646 = vadd.f32 %v1638, %v1640
        %v1647 = vadd.f32 %v1646, %v1642
        %v1648 = vadd.f32 %v1647, %v1644
        %v1649 = vrot.slane %v1648, 4
        %v1650 = vadd.f32 %v1648, %v1649
        %v1651 = vrot.slane %v1650, 2
        %v1652 = vadd.f32 %v1650, %v1651
        %v1653 = vrot.slane %v1652, 1
        %v1654 = vadd.f32 %v1652, %v1653
        %v1655 = vadd.f32 %v1639, %v1641
        %v1656 = vadd.f32 %v1655, %v1643
        %v1657 = vadd.f32 %v1656, %v1645
        %v1658 = vrot.slane %v1657, 4
        %v1659 = vadd.f32 %v1657, %v1658
        %v1660 = vrot.slane %v1659, 2
        %v1661 = vadd.f32 %v1659, %v1660
        %v1662 = vrot.slane %v1661, 1
        %v1663 = vadd.f32 %v1661, %v1662
        %v1664 = vadd.f32 %v1654, %v1279
        %v1665 = vadd.f32 %v1663, %v1279
        %v1666 = vxor.u32 %v1664, 2147483648
        %v1667 = vxor.u32 %v1665, 2147483648
        %v1668 = vmul.f32 %v1666, 1.442695
        %v1669 = vpow.pop %v1668
        %v1670 = vmul.f32 %v1667, 1.442695
        %v1671 = vpow.pop %v1670
        %v1672 = vadd.f32 %v1669, 1.0
        %v1673 = vadd.f32 %v1671, 1.0
        %v1674 = vrcp.pop %v1672
        %v1675 = vmul.f32 1.0, %v1674
        %v1676 = vrcp.pop %v1673
        %v1677 = vmul.f32 1.0, %v1676
        %v1678 = vadd.f32 %v1175, %v366
        %v1679 = vadd.f32 %v1177, %v366
        %v1680 = vadd.f32 %v1181, %v371
        %v1681 = vadd.f32 %v1183, %v371
        %v1682 = vadd.f32 %v1187, %v376
        %v1683 = vadd.f32 %v1189, %v376
        %v1684 = vadd.f32 %v1193, %v381
        %v1685 = vadd.f32 %v1195, %v381
        %v1686 = vxor.u32 %v1678, 2147483648
        %v1687 = vxor.u32 %v1679, 2147483648
        %v1688 = vxor.u32 %v1680, 2147483648
        %v1689 = vxor.u32 %v1681, 2147483648
        %v1690 = vxor.u32 %v1682, 2147483648
        %v1691 = vxor.u32 %v1683, 2147483648
        %v1692 = vxor.u32 %v1684, 2147483648
        %v1693 = vxor.u32 %v1685, 2147483648
        %v1694 = vmul.f32 %v1686, 1.442695
        %v1695 = vpow.pop %v1694
        %v1696 = vmul.f32 %v1687, 1.442695
        %v1697 = vpow.pop %v1696
        %v1698 = vmul.f32 %v1688, 1.442695
        %v1699 = vpow.pop %v1698
        %v1700 = vmul.f32 %v1689, 1.442695
        %v1701 = vpow.pop %v1700
        %v1702 = vmul.f32 %v1690, 1.442695
        %v1703 = vpow.pop %v1702
        %v1704 = vmul.f32 %v1691, 1.442695
        %v1705 = vpow.pop %v1704
        %v1706 = vmul.f32 %v1692, 1.442695
        %v1707 = vpow.pop %v1706
        %v1708 = vmul.f32 %v1693, 1.442695
        %v1709 = vpow.pop %v1708
        %v1710 = vadd.f32 %v1695, 1.0
        %v1711 = vadd.f32 %v1697, 1.0
        %v1712 = vadd.f32 %v1699, 1.0
        %v1713 = vadd.f32 %v1701, 1.0
        %v1714 = vadd.f32 %v1703, 1.0
        %v1715 = vadd.f32 %v1705, 1.0
        %v1716 = vadd.f32 %v1707, 1.0
        %v1717 = vadd.f32 %v1709, 1.0
        %v1718 = vrcp.pop %v1710
        %v1719 = vmul.f32 1.0, %v1718
        %v1720 = vrcp.pop %v1711
        %v1721 = vmul.f32 1.0, %v1720
        %v1722 = vrcp.pop %v1712
        %v1723 = vmul.f32 1.0, %v1722
        %v1724 = vrcp.pop %v1713
        %v1725 = vmul.f32 1.0, %v1724
        %v1726 = vrcp.pop %v1714
        %v1727 = vmul.f32 1.0, %v1726
        %v1728 = vrcp.pop %v1715
        %v1729 = vmul.f32 1.0, %v1728
        %v1730 = vrcp.pop %v1716
        %v1731 = vmul.f32 1.0, %v1730
        %v1732 = vrcp.pop %v1717
        %v1733 = vmul.f32 1.0, %v1732
        %v1734 = vmul.f32 %v1719, %v390
        %v1735 = vmul.f32 %v1721, %v390
        %v1736 = vmul.f32 %v1723, %v395
        %v1737 = vmul.f32 %v1725, %v395
        %v1738 = vmul.f32 %v1727, %v400
        %v1739 = vmul.f32 %v1729, %v400
        %v1740 = vmul.f32 %v1731, %v405
        %v1741 = vmul.f32 %v1733, %v405
        %v1742 = vadd.f32 %v1734, %v1736
        %v1743 = vadd.f32 %v1742, %v1738
        %v1744 = vadd.f32 %v1743, %v1740
        %v1745 = vrot.slane %v1744, 4
        %v1746 = vadd.f32 %v1744, %v1745
        %v1747 = vrot.slane %v1746, 2
        %v1748 = vadd.f32 %v1746, %v1747
        %v1749 = vrot.slane %v1748, 1
        %v1750 = vadd.f32 %v1748, %v1749
        %v1751 = vadd.f32 %v1735, %v1737
        %v1752 = vadd.f32 %v1751, %v1739
        %v1753 = vadd.f32 %v1752, %v1741
        %v1754 = vrot.slane %v1753, 4
        %v1755 = vadd.f32 %v1753, %v1754
        %v1756 = vrot.slane %v1755, 2
        %v1757 = vadd.f32 %v1755, %v1756
        %v1758 = vrot.slane %v1757, 1
        %v1759 = vadd.f32 %v1757, %v1758
        %v1760 = vadd.f32 %v1750, %v1279
        %v1761 = vadd.f32 %v1759, %v1279
        %v1762 = vxor.u32 %v1760, 2147483648
        %v1763 = vxor.u32 %v1761, 2147483648
        %v1764 = vmul.f32 %v1762, 1.442695
        %v1765 = vpow.pop %v1764
        %v1766 = vmul.f32 %v1763, 1.442695
        %v1767 = vpow.pop %v1766
        %v1768 = vadd.f32 %v1765, 1.0
        %v1769 = vadd.f32 %v1767, 1.0
        %v1770 = vrcp.pop %v1768
        %v1771 = vmul.f32 1.0, %v1770
        %v1772 = vrcp.pop %v1769
        %v1773 = vmul.f32 1.0, %v1772
        %v1774 = vmax.f32 %v1291, %v1387
        %v1775 = vmax.f32 %v1293, %v1389
        %v1776 = vmax.f32 %v1774, %v1483
        %v1777 = vmax.f32 %v1775, %v1485
        %v1778 = vmax.f32 %v1776, %v1579
        %v1779 = vmax.f32 %v1777, %v1581
        %v1780 = vmax.f32 %v1778, %v1675
        %v1781 = vmax.f32 %v1779, %v1677
        %v1782 = vmax.f32 %v1780, %v1771
        %v1783 = vmax.f32 %v1781, %v1773
        %v1784 = vsub.f32 %v1291, %v1782
        %v1785 = vsub.f32 %v1293, %v1783
        %v1786 = vmul.f32 %v1784, 1.442695
        %v1787 = vpow.pop %v1786
        %v1788 = vmul.f32 %v1785, 1.442695
        %v1789 = vpow.pop %v1788
        %v1790 = vsub.f32 %v1387, %v1782
        %v1791 = vsub.f32 %v1389, %v1783
        %v1792 = vmul.f32 %v1790, 1.442695
        %v1793 = vpow.pop %v1792
        %v1794 = vmul.f32 %v1791, 1.442695
        %v1795 = vpow.pop %v1794
        %v1796 = vsub.f32 %v1483, %v1782
        %v1797 = vsub.f32 %v1485, %v1783
        %v1798 = vmul.f32 %v1796, 1.442695
        %v1799 = vpow.pop %v1798
        %v1800 = vmul.f32 %v1797, 1.442695
        %v1801 = vpow.pop %v1800
        %v1802 = vsub.f32 %v1579, %v1782
        %v1803 = vsub.f32 %v1581, %v1783
        %v1804 = vmul.f32 %v1802, 1.442695
        %v1805 = vpow.pop %v1804
        %v1806 = vmul.f32 %v1803, 1.442695
        %v1807 = vpow.pop %v1806
        %v1808 = vsub.f32 %v1675, %v1782
        %v1809 = vsub.f32 %v1677, %v1783
        %v1810 = vmul.f32 %v1808, 1.442695
        %v1811 = vpow.pop %v1810
        %v1812 = vmul.f32 %v1809, 1.442695
        %v1813 = vpow.pop %v1812
        %v1814 = vsub.f32 %v1771, %v1782
        %v1815 = vsub.f32 %v1773, %v1783
        %v1816 = vmul.f32 %v1814, 1.442695
        %v1817 = vpow.pop %v1816
        %v1818 = vmul.f32 %v1815, 1.442695
        %v1819 = vpow.pop %v1818
        %v1820 = vadd.f32 %v1787, %v1793
        %v1821 = vadd.f32 %v1789, %v1795
        %v1822 = vadd.f32 %v1820, %v1799
        %v1823 = vadd.f32 %v1821, %v1801
        %v1824 = vadd.f32 %v1822, %v1805
        %v1825 = vadd.f32 %v1823, %v1807
        %v1826 = vadd.f32 %v1824, %v1811
        %v1827 = vadd.f32 %v1825, %v1813
        %v1828 = vadd.f32 %v1826, %v1817
        %v1829 = vadd.f32 %v1827, %v1819
        %v1830 = vmul.f32 %v1787, %v748
        %v1831 = vmul.f32 %v1789, %v750
        %v1832 = vmul.f32 %v1793, %v837
        %v1833 = vmul.f32 %v1795, %v839
        %v1834 = vadd.f32 %v1830, %v1832
        %v1835 = vadd.f32 %v1831, %v1833
        %v1836 = vmul.f32 %v1799, %v926
        %v1837 = vmul.f32 %v1801, %v928
        %v1838 = vadd.f32 %v1834, %v1836
        %v1839 = vadd.f32 %v1835, %v1837
        %v1840 = vmul.f32 %v1805, %v1015
        %v1841 = vmul.f32 %v1807, %v1017
        %v1842 = vadd.f32 %v1838, %v1840
        %v1843 = vadd.f32 %v1839, %v1841
        %v1844 = vmul.f32 %v1811, %v1104
        %v1845 = vmul.f32 %v1813, %v1106
        %v1846 = vadd.f32 %v1842, %v1844
        %v1847 = vadd.f32 %v1843, %v1845
        %v1848 = vmul.f32 %v1817, %v1193
        %v1849 = vmul.f32 %v1819, %v1195
        %v1850 = vadd.f32 %v1846, %v1848
        %v1851 = vadd.f32 %v1847, %v1849
        %v1852 = vrcp.pop %v1828
        %v1853 = vmul.f32 %v1850, %v1852
        %v1854 = vrcp.pop %v1829
        %v1855 = vmul.f32 %v1851, %v1854
        %v1856 = vld [vmem:[%s351] sm:$0x3]
        %v1859 = vcombine.high %v1853, %v1855
        %v1861 = vunpack.c.l.s4 1966171168
        %v1862 = vunpack.c.0.s8 %v1861
        %v1863 = vlaneseq
        %v1864 = vshrl.u32 %v1863, 7
        %v1865 = vsub.s32 %v1862, %v1864
        %v1866 = vrot.slane %v1859, %v1865
        %v1868 = vunpack.c.l.s4 1966171168
        %v1869 = vunpack.c.0.s8 %v1868
        %v1870 = vlaneseq
        %v1871 = vshrl.u32 %v1870, 7
        %v1872 = vsub.s32 %v1869, %v1871
        %v1873 = vrot.slane %v1866, %v1872
        %v1874 = vcombine.high %v1873, %v1873
        %v1876 = vadd.f32 %v1856, %v1874
        %v1877 = vxor.u32 %v1876, 2147483648
        %v1878 = vmul.f32 %v1877, 1.442695
        %v1879 = vpow.pop %v1878
        %v1880 = vadd.f32 %v1879, 1.0
        %v1881 = vrcp.pop %v1880
        %v1882 = vmul.f32 1.0, %v1881
        %v1883 = vmul.f32 %v1882, 2.0
        %v1884 = vsub.f32 %v1883, 1.0
        %v1885 = vlaneseq
        %vm1886 = vcmp.ge.s32.totalorder %v1885, 0
        %vm1887 = vcmp.lt.s32.totalorder %v1885, 256
        %vm1888 = vmand %vm1886, %vm1887
        %1889 = vst.msk [vmem:[%s346] sm:$0x3] %vm1888, %v1884
        %s1890 = sand.u32 %s165, 1
        %s1891 = scalar_lea.sflag [#allocation6], %s1890
        %s1892 = sand.u32 %s165, 1
        %s1893 = smul.addr %s1892, 2
        %s1894 = scalar_lea.vmem [#allocation5], %s1893
        // Predicated region
        $region68: #{afm_apply.1} parent=62 // pred_check
          %p1895 = pneg %p175
        $region69: #{afm_apply.1} parent=62 // pred_check_branch
          %1897 = sbr.rel (%p1895) target = $region71
        $region70: #{afm_apply.1} parent=62 // pred_region
          %s1898 = smul.u32 2, %s21
          %s1900 = ssub.s32 32, 32
          %1901 = vsyncadd %s1891, %s1900
          %s1902 = smul.addr %s1898, 16
          %s1903 = scalar_lea.hbm %s6, %s1902
          %s1905 = sshll.u32 %s1894, 4
          %s1906 = int_to_ptr.vmem [resolvable:$true] %s1905
          %1908 = dma.vmem_to_hbm [thread:$0]  %s1906, 32, %s1903, %s1891
        $region71: #{afm_apply.1} parent=62 // pred_fallthru
          _
      $region63: #{afm_apply.1} parent=5 // pred_fallthru
        _
      %p1909 = scmp.le.s32.totalorder 2, %s16
      // Predicated region
      $region72: #{afm_apply.1} parent=5 // pred_check
        %p1910 = pneg %p1909
      $region73: #{afm_apply.1} parent=5 // pred_check_branch
        %1912 = sbr.rel (%p1910) target = $region75
      $region74: #{afm_apply.1} parent=5 // pred_region
        %s1913 = ssub.s32 %s16, 2
        // Predicated region
        $region76: #{afm_apply.1} parent=74 // pred_check
          %p1914 = pneg %p181
        $region77: #{afm_apply.1} parent=74 // pred_check_branch
          %1916 = sbr.rel (%p1914) target = $region79
        $region78: #{afm_apply.1} parent=74 // pred_region
          %s1917 = sand.u32 %s166, 1
          %s1918 = scalar_lea.sflag [#allocation6], %s1917
          %s1919 = sand.u32 %s166, 1
          %s1920 = smul.addr %s1919, 2
          %s1921 = scalar_lea.vmem [#allocation5], %s1920
          %1922 = dma.done %s1918, 32
        $region79: #{afm_apply.1} parent=74 // pred_fallthru
          _
      $region75: #{afm_apply.1} parent=5 // pred_fallthru
        _
    $region6: #{afm_apply.1} parent=1 // loop_footer
      %s20 = sadd.s32 1, %s16
    $region7: #{afm_apply.1} parent=1 // loop_footer_branch
      %15 = sbr.rel target = $region3
    $region8: #{afm_apply.1} parent=1 // loop_exit
      _
    %1923 = vsyncpa [#allocation6], 1
    %s1924 = scalar_lea.sflag [#allocation6], 1
    %1925 = vsyncpa %s1924, 1

</llo_original>
